<compile_context>
chip_gen: v7x
topology: tpu7x:2x2x1
jax: 0.10.0
libtpu: 0.0.40
codegen_flags: <defaults>
</compile_context>

<pallas_src>
import functools

import jax
import jax.numpy as jnp
from jax.experimental import pallas as pl
from jax.experimental.pallas import tpu as pltpu

BN_EPS = 1e-5
_VMEM_LIMIT = 32 * 1024 * 1024      # explicit scoped-VMEM budget (safe on v5e/v6e/v7x)
_TARGET_TILE_LANES = 1024           # ~512-1024 output lanes per grid step


def _compiler_params():
    return pltpu.CompilerParams(
        dimension_semantics=("parallel",),
        vmem_limit_bytes=_VMEM_LIMIT,
    )


# ------------------------------ Pallas kernels ------------------------------ #
def _conv_stats_kernel(x_ref, w_ref, b_ref, mask_ref, conv_ref, stats_ref, *, Wp, tm):
    """Pass 1: 3x3 conv (+bias) on one lane-dense tile + per-tile BN partial sums.

    x_ref:     (Cin, L_in)    flattened, spatially padded input rows of this tile
    w_ref:     (9, Cout, Cin) conv taps, k = ky*3 + kx
    b_ref:     (Cout, 1)      conv bias
    mask_ref:  (1, tm)        1.0 on real output columns, 0.0 on padding lanes
    conv_ref:  (Cout, tm)     conv + bias output (lane-dense)
    stats_ref: (Cout, 2)      per-tile (sum, sum of squares) over valid lanes
    """
    xt = x_ref[...]
    cout = conv_ref.shape[0]
    acc = jnp.zeros((cout, tm), jnp.float32)
    for ky in range(3):
        for kx in range(3):
            off = ky * Wp + kx                     # static lane offset of this tap
            acc += jnp.dot(w_ref[ky * 3 + kx], xt[:, off:off + tm],
                           preferred_element_type=jnp.float32)
    acc += b_ref[...]                              # bias, broadcast over lanes
    conv_ref[...] = acc
    masked = acc * mask_ref[...]                   # drop junk padding columns
    stats_ref[:, 0:1] = jnp.sum(masked, axis=1, keepdims=True)
    stats_ref[:, 1:2] = jnp.sum(masked * acc, axis=1, keepdims=True)


def _bn_relu_kernel(conv_ref, stats_ref, gamma_ref, beta_ref, o_ref, *, inv_count):
    """Pass 2: BatchNorm (global batch stats, biased var) + affine + ReLU."""
    mean = stats_ref[:, 0:1] * inv_count                       # (Cout, 1)
    var = stats_ref[:, 1:2] * inv_count - mean * mean          # biased var (PyTorch BN fwd)
    inv_std = jax.lax.rsqrt(var + BN_EPS)
    scale = gamma_ref[...] * inv_std
    shift = beta_ref[...] - mean * scale
    o_ref[...] = jnp.maximum(conv_ref[...] * scale + shift, 0.0)


# ------------------------------ JAX glue ------------------------------------ #
def _upsample_matrix(in_size, out_size, dtype=jnp.float32):
    """Interpolation matrix (out_size, in_size): bilinear, align_corners=True."""
    scale = (in_size - 1) / (out_size - 1) if out_size > 1 else 0.0
    src = jnp.arange(out_size, dtype=jnp.float32) * scale
    i0 = jnp.clip(jnp.floor(src).astype(jnp.int32), 0, in_size - 1)
    i1 = jnp.clip(i0 + 1, 0, in_size - 1)
    frac = src - i0.astype(jnp.float32)
    rows = jnp.arange(out_size)
    A = jnp.zeros((out_size, in_size), dtype)
    A = A.at[rows, i0].add((1.0 - frac).astype(dtype))
    A = A.at[rows, i1].add(frac.astype(dtype))
    return A


def _bilinear_upsample_x2(x):
    """(N, Cin, H, W) -> (N, Cin, 2H, 2W), bilinear, align_corners=True."""
    _, _, H, W = x.shape
    A_h = _upsample_matrix(H, 2 * H)
    A_w = _upsample_matrix(W, 2 * W)
    return jnp.einsum("nchw,ph,qw->ncpq", x, A_h, A_w)


def _tile_geometry(H2, W2):
    """Rows-per-tile TH (divisor of H2) and padded row width Wp (>= W2 + 2)."""
    th = 1
    for d in range(1, H2 + 1):
        if H2 % d == 0 and d * (W2 + 2) <= _TARGET_TILE_LANES:
            th = d
    wp = W2 + 2
    for cand in range(W2 + 2, W2 + 2 + 9):      # bump <=8 cols for 128-lane alignment
        if (th * cand) % 128 == 0:
            wp = cand
            break
    return th, wp


@jax.jit
def up_conv_block(x, weight, bias, gamma, beta):
    """x: (N, Cin, H, W) f32; weight: (Cout, Cin, 3, 3); returns (N, Cout, 2H, 2W)."""
    N, Cin, H, W = x.shape
    Cout = weight.shape[0]
    H2, W2 = 2 * H, 2 * W

    TH, Wp = _tile_geometry(H2, W2)
    n_t = H2 // TH
    T = N * n_t
    tm = TH * Wp                                      # output lanes per tile (lane-dense)
    L_in0 = (TH + 2) * Wp
    L_in = ((L_in0 + 2 + 127) // 128) * 128           # +2 slack: last-row junk-column taps

    # Bilinear upsample (align_corners=True), channels-first — no layout transposes.
    up = _bilinear_upsample_x2(x)                     # (N, Cin, H2, W2)

    # Zero-pad for the 3x3 / pad=1 conv, then gather non-overlapping row tiles + halo.
    up_pad = jnp.pad(up, ((0, 0), (0, 0), (1, 1), (1, Wp - W2 - 1)))   # (N, Cin, H2+2, Wp)
    tiles = [up_pad[:, :, t * TH:t * TH + TH + 2, :] for t in range(n_t)]
    x_t = jnp.stack(tiles, axis=1)                    # (N, n_t, Cin, TH+2, Wp)
    x_flat = x_t.reshape(T, Cin, L_in0)
    x_flat = jnp.pad(x_flat, ((0, 0), (0, 0), (0, L_in - L_in0)))

    w9 = jnp.transpose(weight, (2, 3, 0, 1)).reshape(9, Cout, Cin)     # [ky*3+kx, co, ci]
    b2 = bias.reshape(Cout, 1)
    mask = (jnp.arange(tm) % Wp < W2).astype(jnp.float32).reshape(1, tm)

    # Pass 1: conv + bias (lane-dense tiles) + per-tile BN partial sums.  Parallel grid.
    conv, partials = pl.pallas_call(
        functools.partial(_conv_stats_kernel, Wp=Wp, tm=tm),
        out_shape=(jax.ShapeDtypeStruct((T, Cout, tm), jnp.float32),
                   jax.ShapeDtypeStruct((T, Cout, 2), jnp.float32)),
        grid=(T,),
        in_specs=[
            pl.BlockSpec((None, Cin, L_in), lambda t: (t, 0, 0)),
            pl.BlockSpec((9, Cout, Cin), lambda t: (0, 0, 0)),
            pl.BlockSpec((Cout, 1), lambda t: (0, 0)),
            pl.BlockSpec((1, tm), lambda t: (0, 0)),
        ],
        out_specs=(pl.BlockSpec((None, Cout, tm), lambda t: (t, 0, 0)),
                   pl.BlockSpec((None, Cout, 2), lambda t: (t, 0, 0))),
        compiler_params=_compiler_params(),
    )(x_flat, w9, b2, mask)

    # Tiny cross-tile reduction (O(T*Cout)) for GLOBAL BatchNorm statistics.
    stats = jnp.sum(partials, axis=0)                 # (Cout, 2): [sum, sumsq]

    # Pass 2: normalize + affine + ReLU.  Fully parallel over tiles.
    inv_count = 1.0 / float(N * H2 * W2)
    out2 = pl.pallas_call(
        functools.partial(_bn_relu_kernel, inv_count=inv_count),
        out_shape=jax.ShapeDtypeStruct((T, Cout, tm), jnp.float32),
        grid=(T,),
        in_specs=[
            pl.BlockSpec((None, Cout, tm), lambda t: (t, 0, 0)),
            pl.BlockSpec((Cout, 2), lambda t: (0, 0)),
            pl.BlockSpec((Cout, 1), lambda t: (0, 0)),
            pl.BlockSpec((Cout, 1), lambda t: (0, 0)),
        ],
        out_specs=pl.BlockSpec((None, Cout, tm), lambda t: (t, 0, 0)),
        compiler_params=_compiler_params(),
    )(conv, stats, gamma.reshape(Cout, 1), beta.reshape(Cout, 1))

    # Reassemble to NCHW: only a leading-axis permute + drop the padding columns.
    out = out2.reshape(N, n_t, Cout, TH, Wp).transpose(0, 2, 1, 3, 4)
    return out.reshape(N, Cout, H2, Wp)[..., :W2]


# ------------------------- pure-JAX reference (check) ----------------------- #
def _reference(x, weight, bias, gamma, beta):
    up = _bilinear_upsample_x2(x)
    conv = jax.lax.conv_general_dilated(
        up, weight, window_strides=(1, 1), padding=((1, 1), (1, 1)),
        dimension_numbers=("NCHW", "OIHW", "NCHW"),
        precision=jax.lax.Precision.HIGHEST) + bias.reshape(1, -1, 1, 1)
    mean = conv.mean(axis=(0, 2, 3), keepdims=True)
    var = ((conv - mean) ** 2).mean(axis=(0, 2, 3), keepdims=True)
    y = (conv - mean) / jnp.sqrt(var + BN_EPS) * gamma.reshape(1, -1, 1, 1) \
        + beta.reshape(1, -1, 1, 1)
    return jnp.maximum(y, 0.0)


# ------------------------------- main --------------------------------------- #
if __name__ == "__main__":
    N, Cin, Cout, H, W = 2, 4, 8, 16, 16

    key = jax.random.PRNGKey(0)
    k_x, k_w, k_g = jax.random.split(key, 3)

    x = jax.random.normal(k_x, (N, Cin, H, W), dtype=jnp.float32)

    # Deterministic params mimicking weights_init_kaiming:
    #   conv weight ~ kaiming-normal (fan_in = Cin*3*3), conv bias = 0,
    #   BN weight ~ N(1, 0.02), BN bias = 0.
    fan_in = Cin * 3 * 3
    weight = jax.random.normal(k_w, (Cout, Cin, 3, 3), dtype=jnp.float32) * jnp.sqrt(2.0 / fan_in)
    bias = jnp.zeros((Cout,), jnp.float32)
    gamma = 1.0 + 0.02 * jax.random.normal(k_g, (Cout,), dtype=jnp.float32)
    beta = jnp.zeros((Cout,), jnp.float32)

    out = jax.block_until_ready(up_conv_block(x, weight, bias, gamma, beta))
    assert out.shape == (N, Cout, 2 * H, 2 * W), out.shape

    ref = jax.block_until_ready(_reference(x, weight, bias, gamma, beta))
    max_err = float(jnp.max(jnp.abs(out - ref)))
    assert jnp.allclose(out, ref, atol=1e-2, rtol=1e-2), f"max abs err = {max_err}"

    print("KERNEL_OK")
</pallas_src>

<mosaic_0001>
module attributes {stable_mosaic.version = 11 : i64} {
  func.func private @main(%arg0: i32) attributes {dimension_semantics = [#tpu.dimension_semantics<core_parallel>], iteration_bounds = array<i64: 2>, tpu.core_type = #tpu.core_type<sc_scalar_subcore>, window_params = []} {
    return
  }
}

module attributes {stable_mosaic.version = 11 : i64} {
  func.func private @main(%arg0: i32) attributes {dimension_semantics = [#tpu.dimension_semantics<core_parallel>], iteration_bounds = array<i64: 2>, tpu.core_type = #tpu.core_type<sc_scalar_subcore>, window_params = []} {
    return
  }
}

module attributes {stable_mosaic.version = 11 : i64} {
  func.func @_conv_stats_kernel(%arg0: i32, %arg1: memref<1x4x768xf32, #tpu.memory_space<vmem>>, %arg2: memref<9x8x4xf32, #tpu.memory_space<vmem>>, %arg3: memref<8x1xf32, #tpu.memory_space<vmem>>, %arg4: memref<1x640xf32, #tpu.memory_space<vmem>>, %arg5: memref<1x8x640xf32, #tpu.memory_space<vmem>>, %arg6: memref<1x8x2xf32, #tpu.memory_space<vmem>>) attributes {dimension_semantics = [#tpu.dimension_semantics<parallel>], iteration_bounds = array<i64: 4>, scalar_prefetch = 0 : i64, scratch_operands = 0 : i64, tpu.core_type = #tpu.core_type<tc>, window_params = [{transform_indices = @transform_0, window_bounds = array<i64: 1, 4, 768>}, {pipeline_mode = #tpu.pipeline_mode<synchronous>, transform_indices = @transform_1, window_bounds = array<i64: 9, 8, 4>}, {pipeline_mode = #tpu.pipeline_mode<synchronous>, transform_indices = @transform_2, window_bounds = array<i64: 8, 1>}, {pipeline_mode = #tpu.pipeline_mode<synchronous>, transform_indices = @transform_3, window_bounds = array<i64: 1, 640>}, {transform_indices = @transform_4, window_bounds = array<i64: 1, 8, 640>}, {transform_indices = @transform_5, window_bounds = array<i64: 1, 8, 2>}]} {
    %c0 = arith.constant 0 : index
    %c0_0 = arith.constant 0 : index
    %c0_1 = arith.constant 0 : index
    %0 = vector.load %arg1[%c0, %c0_0, %c0_1] : memref<1x4x768xf32, #tpu.memory_space<vmem>>, vector<1x4x768xf32>
    %1 = vector.shape_cast %0 : vector<1x4x768xf32> to vector<4x768xf32>
    %cst = arith.constant 0.000000e+00 : f32
    %2 = vector.broadcast %cst : f32 to vector<8x640xf32>
    %c0_2 = arith.constant 0 : index
    %c0_3 = arith.constant 0 : index
    %c0_4 = arith.constant 0 : index
    %3 = vector.load %arg2[%c0_2, %c0_3, %c0_4] : memref<9x8x4xf32, #tpu.memory_space<vmem>>, vector<1x8x4xf32>
    %4 = vector.shape_cast %3 : vector<1x8x4xf32> to vector<8x4xf32>
    %5 = vector.extract_strided_slice %1 {offsets = [0, 0], sizes = [4, 640], strides = [1, 1]} : vector<4x768xf32> to vector<4x640xf32>
    %cst_5 = arith.constant dense<0.000000e+00> : vector<8x640xf32>
    %6 = tpu.matmul %4, %5, %cst_5 {dimension_numbers = #tpu.dot_dimension_numbers<[1], [0], [0], [1], [0, 0, 1, 1], [], []>} : vector<8x4xf32>, vector<4x640xf32>, vector<8x640xf32> -> vector<8x640xf32>
    %7 = arith.addf %2, %6 : vector<8x640xf32>
    %c1 = arith.constant 1 : index
    %c0_6 = arith.constant 0 : index
    %c0_7 = arith.constant 0 : index
    %8 = vector.load %arg2[%c1, %c0_6, %c0_7] : memref<9x8x4xf32, #tpu.memory_space<vmem>>, vector<1x8x4xf32>
    %9 = vector.shape_cast %8 : vector<1x8x4xf32> to vector<8x4xf32>
    %10 = vector.extract_strided_slice %1 {offsets = [0, 1], sizes = [4, 640], strides = [1, 1]} : vector<4x768xf32> to vector<4x640xf32>
    %cst_8 = arith.constant dense<0.000000e+00> : vector<8x640xf32>
    %11 = tpu.matmul %9, %10, %cst_8 {dimension_numbers = #tpu.dot_dimension_numbers<[1], [0], [0], [1], [0, 0, 1, 1], [], []>} : vector<8x4xf32>, vector<4x640xf32>, vector<8x640xf32> -> vector<8x640xf32>
    %12 = arith.addf %7, %11 : vector<8x640xf32>
    %c2 = arith.constant 2 : index
    %c0_9 = arith.constant 0 : index
    %c0_10 = arith.constant 0 : index
    %13 = vector.load %arg2[%c2, %c0_9, %c0_10] : memref<9x8x4xf32, #tpu.memory_space<vmem>>, vector<1x8x4xf32>
    %14 = vector.shape_cast %13 : vector<1x8x4xf32> to vector<8x4xf32>
    %15 = vector.extract_strided_slice %1 {offsets = [0, 2], sizes = [4, 640], strides = [1, 1]} : vector<4x768xf32> to vector<4x640xf32>
    %cst_11 = arith.constant dense<0.000000e+00> : vector<8x640xf32>
    %16 = tpu.matmul %14, %15, %cst_11 {dimension_numbers = #tpu.dot_dimension_numbers<[1], [0], [0], [1], [0, 0, 1, 1], [], []>} : vector<8x4xf32>, vector<4x640xf32>, vector<8x640xf32> -> vector<8x640xf32>
    %17 = arith.addf %12, %16 : vector<8x640xf32>
    %c3 = arith.constant 3 : index
    %c0_12 = arith.constant 0 : index
    %c0_13 = arith.constant 0 : index
    %18 = vector.load %arg2[%c3, %c0_12, %c0_13] : memref<9x8x4xf32, #tpu.memory_space<vmem>>, vector<1x8x4xf32>
    %19 = vector.shape_cast %18 : vector<1x8x4xf32> to vector<8x4xf32>
    %20 = vector.extract_strided_slice %1 {offsets = [0, 40], sizes = [4, 640], strides = [1, 1]} : vector<4x768xf32> to vector<4x640xf32>
    %cst_14 = arith.constant dense<0.000000e+00> : vector<8x640xf32>
    %21 = tpu.matmul %19, %20, %cst_14 {dimension_numbers = #tpu.dot_dimension_numbers<[1], [0], [0], [1], [0, 0, 1, 1], [], []>} : vector<8x4xf32>, vector<4x640xf32>, vector<8x640xf32> -> vector<8x640xf32>
    %22 = arith.addf %17, %21 : vector<8x640xf32>
    %c4 = arith.constant 4 : index
    %c0_15 = arith.constant 0 : index
    %c0_16 = arith.constant 0 : index
    %23 = vector.load %arg2[%c4, %c0_15, %c0_16] : memref<9x8x4xf32, #tpu.memory_space<vmem>>, vector<1x8x4xf32>
    %24 = vector.shape_cast %23 : vector<1x8x4xf32> to vector<8x4xf32>
    %25 = vector.extract_strided_slice %1 {offsets = [0, 41], sizes = [4, 640], strides = [1, 1]} : vector<4x768xf32> to vector<4x640xf32>
    %cst_17 = arith.constant dense<0.000000e+00> : vector<8x640xf32>
    %26 = tpu.matmul %24, %25, %cst_17 {dimension_numbers = #tpu.dot_dimension_numbers<[1], [0], [0], [1], [0, 0, 1, 1], [], []>} : vector<8x4xf32>, vector<4x640xf32>, vector<8x640xf32> -> vector<8x640xf32>
    %27 = arith.addf %22, %26 : vector<8x640xf32>
    %c5 = arith.constant 5 : index
    %c0_18 = arith.constant 0 : index
    %c0_19 = arith.constant 0 : index
    %28 = vector.load %arg2[%c5, %c0_18, %c0_19] : memref<9x8x4xf32, #tpu.memory_space<vmem>>, vector<1x8x4xf32>
    %29 = vector.shape_cast %28 : vector<1x8x4xf32> to vector<8x4xf32>
    %30 = vector.extract_strided_slice %1 {offsets = [0, 42], sizes = [4, 640], strides = [1, 1]} : vector<4x768xf32> to vector<4x640xf32>
    %cst_20 = arith.constant dense<0.000000e+00> : vector<8x640xf32>
    %31 = tpu.matmul %29, %30, %cst_20 {dimension_numbers = #tpu.dot_dimension_numbers<[1], [0], [0], [1], [0, 0, 1, 1], [], []>} : vector<8x4xf32>, vector<4x640xf32>, vector<8x640xf32> -> vector<8x640xf32>
    %32 = arith.addf %27, %31 : vector<8x640xf32>
    %c6 = arith.constant 6 : index
    %c0_21 = arith.constant 0 : index
    %c0_22 = arith.constant 0 : index
    %33 = vector.load %arg2[%c6, %c0_21, %c0_22] : memref<9x8x4xf32, #tpu.memory_space<vmem>>, vector<1x8x4xf32>
    %34 = vector.shape_cast %33 : vector<1x8x4xf32> to vector<8x4xf32>
    %35 = vector.extract_strided_slice %1 {offsets = [0, 80], sizes = [4, 640], strides = [1, 1]} : vector<4x768xf32> to vector<4x640xf32>
    %cst_23 = arith.constant dense<0.000000e+00> : vector<8x640xf32>
    %36 = tpu.matmul %34, %35, %cst_23 {dimension_numbers = #tpu.dot_dimension_numbers<[1], [0], [0], [1], [0, 0, 1, 1], [], []>} : vector<8x4xf32>, vector<4x640xf32>, vector<8x640xf32> -> vector<8x640xf32>
    %37 = arith.addf %32, %36 : vector<8x640xf32>
    %c7 = arith.constant 7 : index
    %c0_24 = arith.constant 0 : index
    %c0_25 = arith.constant 0 : index
    %38 = vector.load %arg2[%c7, %c0_24, %c0_25] : memref<9x8x4xf32, #tpu.memory_space<vmem>>, vector<1x8x4xf32>
    %39 = vector.shape_cast %38 : vector<1x8x4xf32> to vector<8x4xf32>
    %40 = vector.extract_strided_slice %1 {offsets = [0, 81], sizes = [4, 640], strides = [1, 1]} : vector<4x768xf32> to vector<4x640xf32>
    %cst_26 = arith.constant dense<0.000000e+00> : vector<8x640xf32>
    %41 = tpu.matmul %39, %40, %cst_26 {dimension_numbers = #tpu.dot_dimension_numbers<[1], [0], [0], [1], [0, 0, 1, 1], [], []>} : vector<8x4xf32>, vector<4x640xf32>, vector<8x640xf32> -> vector<8x640xf32>
    %42 = arith.addf %37, %41 : vector<8x640xf32>
    %c8 = arith.constant 8 : index
    %c0_27 = arith.constant 0 : index
    %c0_28 = arith.constant 0 : index
    %43 = vector.load %arg2[%c8, %c0_27, %c0_28] : memref<9x8x4xf32, #tpu.memory_space<vmem>>, vector<1x8x4xf32>
    %44 = vector.shape_cast %43 : vector<1x8x4xf32> to vector<8x4xf32>
    %45 = vector.extract_strided_slice %1 {offsets = [0, 82], sizes = [4, 640], strides = [1, 1]} : vector<4x768xf32> to vector<4x640xf32>
    %cst_29 = arith.constant dense<0.000000e+00> : vector<8x640xf32>
    %46 = tpu.matmul %44, %45, %cst_29 {dimension_numbers = #tpu.dot_dimension_numbers<[1], [0], [0], [1], [0, 0, 1, 1], [], []>} : vector<8x4xf32>, vector<4x640xf32>, vector<8x640xf32> -> vector<8x640xf32>
    %47 = arith.addf %42, %46 : vector<8x640xf32>
    %c0_30 = arith.constant 0 : index
    %c0_31 = arith.constant 0 : index
    %48 = vector.load %arg3[%c0_30, %c0_31] : memref<8x1xf32, #tpu.memory_space<vmem>>, vector<8x1xf32>
    %49 = vector.broadcast %48 : vector<8x1xf32> to vector<8x640xf32>
    %50 = arith.addf %47, %49 : vector<8x640xf32>
    %c0_32 = arith.constant 0 : index
    %c0_33 = arith.constant 0 : index
    %c0_34 = arith.constant 0 : index
    %51 = vector.load %arg5[%c0_32, %c0_33, %c0_34] : memref<1x8x640xf32, #tpu.memory_space<vmem>>, vector<1x8x640xf32>
    %52 = vector.shape_cast %51 : vector<1x8x640xf32> to vector<8x640xf32>
    %53 = vector.shape_cast %50 : vector<8x640xf32> to vector<1x8x640xf32>
    tpu.vector_store %arg5[%c0_32, %c0_33, %c0_34], %53 {strides = array<i32>} : memref<1x8x640xf32, #tpu.memory_space<vmem>>, vector<1x8x640xf32>,
    %c0_35 = arith.constant 0 : index
    %c0_36 = arith.constant 0 : index
    %54 = vector.load %arg4[%c0_35, %c0_36] : memref<1x640xf32, #tpu.memory_space<vmem>>, vector<1x640xf32>
    %55 = vector.broadcast %54 : vector<1x640xf32> to vector<8x640xf32>
    %56 = arith.mulf %50, %55 : vector<8x640xf32>
    %cst_37 = arith.constant dense<0.000000e+00> : vector<8xf32>
    %57 = vector.multi_reduction <add>, %56, %cst_37 [1] : vector<8x640xf32> to vector<8xf32>
    %58 = vector.shape_cast %57 : vector<8xf32> to vector<8x1xf32>
    %c0_38 = arith.constant 0 : index
    %c0_39 = arith.constant 0 : index
    %c0_40 = arith.constant 0 : index
    %59 = vector.load %arg6[%c0_38, %c0_39, %c0_40] : memref<1x8x2xf32, #tpu.memory_space<vmem>>, vector<1x8x1xf32>
    %60 = vector.shape_cast %59 : vector<1x8x1xf32> to vector<8x1xf32>
    %61 = vector.shape_cast %58 : vector<8x1xf32> to vector<1x8x1xf32>
    tpu.vector_store %arg6[%c0_38, %c0_39, %c0_40], %61 {strides = array<i32>} : memref<1x8x2xf32, #tpu.memory_space<vmem>>, vector<1x8x1xf32>,
    %62 = arith.mulf %56, %50 : vector<8x640xf32>
    %cst_41 = arith.constant dense<0.000000e+00> : vector<8xf32>
    %63 = vector.multi_reduction <add>, %62, %cst_41 [1] : vector<8x640xf32> to vector<8xf32>
    %64 = vector.shape_cast %63 : vector<8xf32> to vector<8x1xf32>
    %c0_42 = arith.constant 0 : index
    %c0_43 = arith.constant 0 : index
    %c1_44 = arith.constant 1 : index
    %65 = vector.load %arg6[%c0_42, %c0_43, %c1_44] : memref<1x8x2xf32, #tpu.memory_space<vmem>>, vector<1x8x1xf32>
    %66 = vector.shape_cast %65 : vector<1x8x1xf32> to vector<8x1xf32>
    %67 = vector.shape_cast %64 : vector<8x1xf32> to vector<1x8x1xf32>
    tpu.vector_store %arg6[%c0_42, %c0_43, %c1_44], %67 {strides = array<i32>} : memref<1x8x2xf32, #tpu.memory_space<vmem>>, vector<1x8x1xf32>,
    return
  }
  func.func @transform_0(%arg0: i32) -> (i32, i32, i32) {
    %c0_i32 = arith.constant 0 : i32
    %c0_i32_0 = arith.constant 0 : i32
    %c0_i32_1 = arith.constant 0 : i32
    return %arg0, %c0_i32, %c0_i32_0 : i32, i32, i32
  }
  func.func @transform_1(%arg0: i32) -> (i32, i32, i32) {
    %c0_i32 = arith.constant 0 : i32
    %c0_i32_0 = arith.constant 0 : i32
    %c0_i32_1 = arith.constant 0 : i32
    %c0_i32_2 = arith.constant 0 : i32
    return %c0_i32, %c0_i32_0, %c0_i32_1 : i32, i32, i32
  }
  func.func @transform_2(%arg0: i32) -> (i32, i32) {
    %c0_i32 = arith.constant 0 : i32
    %c0_i32_0 = arith.constant 0 : i32
    %c0_i32_1 = arith.constant 0 : i32
    return %c0_i32, %c0_i32_0 : i32, i32
  }
  func.func @transform_3(%arg0: i32) -> (i32, i32) {
    %c0_i32 = arith.constant 0 : i32
    %c0_i32_0 = arith.constant 0 : i32
    %c0_i32_1 = arith.constant 0 : i32
    return %c0_i32, %c0_i32_0 : i32, i32
  }
  func.func @transform_4(%arg0: i32) -> (i32, i32, i32) {
    %c0_i32 = arith.constant 0 : i32
    %c0_i32_0 = arith.constant 0 : i32
    %c0_i32_1 = arith.constant 0 : i32
    return %arg0, %c0_i32, %c0_i32_0 : i32, i32, i32
  }
  func.func @transform_5(%arg0: i32) -> (i32, i32, i32) {
    %c0_i32 = arith.constant 0 : i32
    %c0_i32_0 = arith.constant 0 : i32
    %c0_i32_1 = arith.constant 0 : i32
    return %arg0, %c0_i32, %c0_i32_0 : i32, i32, i32
  }
}

module attributes {stable_mosaic.version = 11 : i64} {
  func.func @_bn_relu_kernel(%arg0: i32, %arg1: memref<1x8x640xf32, #tpu.memory_space<vmem>>, %arg2: memref<8x2xf32, #tpu.memory_space<vmem>>, %arg3: memref<8x1xf32, #tpu.memory_space<vmem>>, %arg4: memref<8x1xf32, #tpu.memory_space<vmem>>, %arg5: memref<1x8x640xf32, #tpu.memory_space<vmem>>) attributes {dimension_semantics = [#tpu.dimension_semantics<parallel>], iteration_bounds = array<i64: 4>, scalar_prefetch = 0 : i64, scratch_operands = 0 : i64, tpu.core_type = #tpu.core_type<tc>, window_params = [{transform_indices = @transform_0, window_bounds = array<i64: 1, 8, 640>}, {pipeline_mode = #tpu.pipeline_mode<synchronous>, transform_indices = @transform_1, window_bounds = array<i64: 8, 2>}, {pipeline_mode = #tpu.pipeline_mode<synchronous>, transform_indices = @transform_2, window_bounds = array<i64: 8, 1>}, {pipeline_mode = #tpu.pipeline_mode<synchronous>, transform_indices = @transform_3, window_bounds = array<i64: 8, 1>}, {transform_indices = @transform_4, window_bounds = array<i64: 1, 8, 640>}]} {
    %c0 = arith.constant 0 : index
    %c0_0 = arith.constant 0 : index
    %0 = vector.load %arg2[%c0, %c0_0] : memref<8x2xf32, #tpu.memory_space<vmem>>, vector<8x1xf32>
    %cst = arith.constant 4.8828125E-4 : f32
    %1 = vector.broadcast %cst : f32 to vector<8x1xf32>
    %2 = arith.mulf %0, %1 : vector<8x1xf32>
    %c0_1 = arith.constant 0 : index
    %c1 = arith.constant 1 : index
    %3 = vector.load %arg2[%c0_1, %c1] : memref<8x2xf32, #tpu.memory_space<vmem>>, vector<8x1xf32>
    %cst_2 = arith.constant 4.8828125E-4 : f32
    %4 = vector.broadcast %cst_2 : f32 to vector<8x1xf32>
    %5 = arith.mulf %3, %4 : vector<8x1xf32>
    %6 = arith.mulf %2, %2 : vector<8x1xf32>
    %7 = arith.subf %5, %6 : vector<8x1xf32>
    %cst_3 = arith.constant 9.99999974E-6 : f32
    %8 = vector.broadcast %cst_3 : f32 to vector<8x1xf32>
    %9 = arith.addf %7, %8 : vector<8x1xf32>
    %10 = math.rsqrt %9 : vector<8x1xf32>
    %c0_4 = arith.constant 0 : index
    %c0_5 = arith.constant 0 : index
    %11 = vector.load %arg3[%c0_4, %c0_5] : memref<8x1xf32, #tpu.memory_space<vmem>>, vector<8x1xf32>
    %12 = arith.mulf %11, %10 : vector<8x1xf32>
    %c0_6 = arith.constant 0 : index
    %c0_7 = arith.constant 0 : index
    %13 = vector.load %arg4[%c0_6, %c0_7] : memref<8x1xf32, #tpu.memory_space<vmem>>, vector<8x1xf32>
    %14 = arith.mulf %2, %12 : vector<8x1xf32>
    %15 = arith.subf %13, %14 : vector<8x1xf32>
    %c0_8 = arith.constant 0 : index
    %c0_9 = arith.constant 0 : index
    %c0_10 = arith.constant 0 : index
    %16 = vector.load %arg1[%c0_8, %c0_9, %c0_10] : memref<1x8x640xf32, #tpu.memory_space<vmem>>, vector<1x8x640xf32>
    %17 = vector.shape_cast %16 : vector<1x8x640xf32> to vector<8x640xf32>
    %18 = vector.broadcast %12 : vector<8x1xf32> to vector<8x640xf32>
    %19 = arith.mulf %17, %18 : vector<8x640xf32>
    %20 = vector.broadcast %15 : vector<8x1xf32> to vector<8x640xf32>
    %21 = arith.addf %19, %20 : vector<8x640xf32>
    %cst_11 = arith.constant 0.000000e+00 : f32
    %22 = vector.broadcast %cst_11 : f32 to vector<8x640xf32>
    %23 = arith.maximumf %21, %22 : vector<8x640xf32>
    %c0_12 = arith.constant 0 : index
    %c0_13 = arith.constant 0 : index
    %c0_14 = arith.constant 0 : index
    %24 = vector.load %arg5[%c0_12, %c0_13, %c0_14] : memref<1x8x640xf32, #tpu.memory_space<vmem>>, vector<1x8x640xf32>
    %25 = vector.shape_cast %24 : vector<1x8x640xf32> to vector<8x640xf32>
    %26 = vector.shape_cast %23 : vector<8x640xf32> to vector<1x8x640xf32>
    tpu.vector_store %arg5[%c0_12, %c0_13, %c0_14], %26 {strides = array<i32>} : memref<1x8x640xf32, #tpu.memory_space<vmem>>, vector<1x8x640xf32>,
    return
  }
  func.func @transform_0(%arg0: i32) -> (i32, i32, i32) {
    %c0_i32 = arith.constant 0 : i32
    %c0_i32_0 = arith.constant 0 : i32
    %c0_i32_1 = arith.constant 0 : i32
    return %arg0, %c0_i32, %c0_i32_0 : i32, i32, i32
  }
  func.func @transform_1(%arg0: i32) -> (i32, i32) {
    %c0_i32 = arith.constant 0 : i32
    %c0_i32_0 = arith.constant 0 : i32
    %c0_i32_1 = arith.constant 0 : i32
    return %c0_i32, %c0_i32_0 : i32, i32
  }
  func.func @transform_2(%arg0: i32) -> (i32, i32) {
    %c0_i32 = arith.constant 0 : i32
    %c0_i32_0 = arith.constant 0 : i32
    %c0_i32_1 = arith.constant 0 : i32
    return %c0_i32, %c0_i32_0 : i32, i32
  }
  func.func @transform_3(%arg0: i32) -> (i32, i32) {
    %c0_i32 = arith.constant 0 : i32
    %c0_i32_0 = arith.constant 0 : i32
    %c0_i32_1 = arith.constant 0 : i32
    return %c0_i32, %c0_i32_0 : i32, i32
  }
  func.func @transform_4(%arg0: i32) -> (i32, i32, i32) {
    %c0_i32 = arith.constant 0 : i32
    %c0_i32_0 = arith.constant 0 : i32
    %c0_i32_1 = arith.constant 0 : i32
    return %arg0, %c0_i32, %c0_i32_0 : i32, i32, i32
  }
}

</mosaic_0001>

<llo_original>
// kernel: up_conv_block.3
$region0: #{up_conv_block.3}
  #allocation0 [shape = 'u32[]', space=smem, size = 0x4, offset = 0x4, fixed_abs, tag = 'smem constant byte address 0x4 - core index']
  #allocation1 [shape = 'u32[144,128]{1,0:T(1,128)}', space=vmem, size = 0x12000, scoped, tag = 'internal scratch']
  %s0 = inlined_call_operand.vmem [shape: f32[4,8,640], index: 0, kind: input, shape index: {}]
  %s1 = inlined_call_operand.vmem [shape: f32[8,2], index: 1, kind: input, shape index: {}]
  %s2 = inlined_call_operand.vmem [shape: f32[8,1], index: 2, kind: input, shape index: {}]
  %s3 = inlined_call_operand.vmem [shape: f32[8,1], index: 3, kind: input, shape index: {}]
  %s4 = inlined_call_operand.vmem [shape: f32[4,8,640], index: 4, kind: output, shape index: {}]
  %s5 = sld [smem:[#allocation0]]
  $region49: #{up_conv_block.3} parent=0
    _
  %s7 = ssub.s32 1, %s5
  %s8 = scalar_select 0, %s7, %s5
  loop: start=0, step=1, limit=6
  $region2: #{up_conv_block.3} parent=0 // loop_pre_header
    _
  $region3: #{up_conv_block.3} parent=0 // loop_header
    %s10 = sphi 0, %s14
    %p11 = scmp.ge.s32.totalorder %s10, 6
    %s20 = sphi 0, %s22
    %s23 = sphi 0, %s20
    %s24 = sphi 0, %s23
    %s40 = sphi 0, %s24
    %s44 = sphi 0, %s44
    %s46 = sphi 0, %s44
    %s47 = sphi 0, %s46
    %s61 = sphi 0, %s47
    %s65 = sphi 0, %s65
    %s67 = sphi 0, %s65
    %s68 = sphi 0, %s67
    %s82 = sphi 0, %s68
    %s86 = sphi 0, %s86
    %s88 = sphi 0, %s86
    %s89 = sphi 0, %s88
    %s103 = sphi 0, %s89
    %s109 = sphi 0, %s111
    %s112 = sphi 0, %s109
    %s113 = sphi 0, %s112
    %s129 = sphi 0, %s113
  $region4: #{up_conv_block.3} parent=0 // loop_header_branch
    %13 = sbr.rel (%p11) target = $region8
  $region5: #{up_conv_block.3} parent=0 // loop_body
    %s15 = ssub.s32 %s10, 1
    %s16 = ssub.s32 %s10, 2
    %s17 = sadd.s32 %s10, 1
    %s18 = ssub.s32 %s10, %s17
    %p19 = scmp.eq.s32.totalorder %s18, 0
    %s21 = sadd.s32 %s20, 1
    %s22 = scalar_select %p19, %s20, %s21
    %p25 = pneg %p19
    %p26 = scmp.eq.s32.totalorder %s10, 3
    %p27 = por %p25, %p26
    %p28 = scmp.ne.s32.totalorder %s20, %s23
    %p29 = scmp.eq.s32.totalorder %s10, 0
    %p30 = por %p28, %p29
    %p31 = scmp.ne.s32.totalorder %s20, %s23
    %p32 = scmp.eq.s32.totalorder %s15, 3
    %p33 = por %p31, %p32
    %p34 = scmp.ne.s32.totalorder %s23, %s24
    %p35 = scmp.eq.s32.totalorder %s15, 0
    %p36 = por %p34, %p35
    %p37 = scmp.ne.s32.totalorder %s23, %s24
    %p38 = scmp.eq.s32.totalorder %s16, 3
    %p39 = por %p37, %p38
    %p41 = scmp.ne.s32.totalorder %s24, %s40
    %p42 = scmp.eq.s32.totalorder %s16, 0
    %p43 = por %p41, %p42
    %s45 = sadd.s32 %s44, 1
    %p48 = scmp.eq.s32.totalorder %s10, 3
    %p49 = scmp.ne.s32.totalorder %s44, %s46
    %p50 = scmp.eq.s32.totalorder %s10, 0
    %p51 = por %p49, %p50
    %p52 = scmp.ne.s32.totalorder %s44, %s46
    %p53 = scmp.eq.s32.totalorder %s15, 3
    %p54 = por %p52, %p53
    %p55 = scmp.ne.s32.totalorder %s46, %s47
    %p56 = scmp.eq.s32.totalorder %s15, 0
    %p57 = por %p55, %p56
    %p58 = scmp.ne.s32.totalorder %s46, %s47
    %p59 = scmp.eq.s32.totalorder %s16, 3
    %p60 = por %p58, %p59
    %p62 = scmp.ne.s32.totalorder %s47, %s61
    %p63 = scmp.eq.s32.totalorder %s16, 0
    %p64 = por %p62, %p63
    %s66 = sadd.s32 %s65, 1
    %p69 = scmp.eq.s32.totalorder %s10, 3
    %p70 = scmp.ne.s32.totalorder %s65, %s67
    %p71 = scmp.eq.s32.totalorder %s10, 0
    %p72 = por %p70, %p71
    %p73 = scmp.ne.s32.totalorder %s65, %s67
    %p74 = scmp.eq.s32.totalorder %s15, 3
    %p75 = por %p73, %p74
    %p76 = scmp.ne.s32.totalorder %s67, %s68
    %p77 = scmp.eq.s32.totalorder %s15, 0
    %p78 = por %p76, %p77
    %p79 = scmp.ne.s32.totalorder %s67, %s68
    %p80 = scmp.eq.s32.totalorder %s16, 3
    %p81 = por %p79, %p80
    %p83 = scmp.ne.s32.totalorder %s68, %s82
    %p84 = scmp.eq.s32.totalorder %s16, 0
    %p85 = por %p83, %p84
    %s87 = sadd.s32 %s86, 1
    %p90 = scmp.eq.s32.totalorder %s10, 3
    %p91 = scmp.ne.s32.totalorder %s86, %s88
    %p92 = scmp.eq.s32.totalorder %s10, 0
    %p93 = por %p91, %p92
    %p94 = scmp.ne.s32.totalorder %s86, %s88
    %p95 = scmp.eq.s32.totalorder %s15, 3
    %p96 = por %p94, %p95
    %p97 = scmp.ne.s32.totalorder %s88, %s89
    %p98 = scmp.eq.s32.totalorder %s15, 0
    %p99 = por %p97, %p98
    %p100 = scmp.ne.s32.totalorder %s88, %s89
    %p101 = scmp.eq.s32.totalorder %s16, 3
    %p102 = por %p100, %p101
    %p104 = scmp.ne.s32.totalorder %s89, %s103
    %p105 = scmp.eq.s32.totalorder %s16, 0
    %p106 = por %p104, %p105
    %s107 = ssub.s32 %s10, %s17
    %p108 = scmp.eq.s32.totalorder %s107, 0
    %s110 = sadd.s32 %s109, 1
    %s111 = scalar_select %p108, %s109, %s110
    %p114 = pneg %p108
    %p115 = scmp.eq.s32.totalorder %s10, 3
    %p116 = por %p114, %p115
    %p117 = scmp.ne.s32.totalorder %s109, %s112
    %p118 = scmp.eq.s32.totalorder %s10, 0
    %p119 = por %p117, %p118
    %p120 = scmp.ne.s32.totalorder %s109, %s112
    %p121 = scmp.eq.s32.totalorder %s15, 3
    %p122 = por %p120, %p121
    %p123 = scmp.ne.s32.totalorder %s112, %s113
    %p124 = scmp.eq.s32.totalorder %s15, 0
    %p125 = por %p123, %p124
    %p126 = scmp.ne.s32.totalorder %s112, %s113
    %p127 = scmp.eq.s32.totalorder %s16, 3
    %p128 = por %p126, %p127
    %p130 = scmp.ne.s32.totalorder %s113, %s129
    %p131 = scmp.eq.s32.totalorder %s16, 0
    %p132 = por %p130, %p131
    %p133 = scmp.le.s32.totalorder 1, %s10
    %p134 = scmp.lt.s32.totalorder %s10, 5
    %p135 = pnand %p133, %p134
    %p136 = pneg %p135
    // Predicated region
    $region9: #{up_conv_block.3} parent=5 // pred_check
      _
    $region10: #{up_conv_block.3} parent=5 // pred_check_branch
      %138 = sbr.rel (%p135) target = $region12
    $region11: #{up_conv_block.3} parent=5 // pred_region
      %s139 = ssub.s32 %s10, 1
      // Predicated region
      $region13: #{up_conv_block.3} parent=11 // pred_check
        %p140 = pneg %p57
      $region14: #{up_conv_block.3} parent=11 // pred_check_branch
        %142 = sbr.rel (%p140) target = $region16
      $region15: #{up_conv_block.3} parent=11 // pred_region
        _
      $region16: #{up_conv_block.3} parent=11 // pred_fallthru
        _
      // Predicated region
      $region17: #{up_conv_block.3} parent=11 // pred_check
        %p143 = pneg %p78
      $region18: #{up_conv_block.3} parent=11 // pred_check_branch
        %145 = sbr.rel (%p143) target = $region20
      $region19: #{up_conv_block.3} parent=11 // pred_region
        _
      $region20: #{up_conv_block.3} parent=11 // pred_fallthru
        _
      // Predicated region
      $region21: #{up_conv_block.3} parent=11 // pred_check
        %p146 = pneg %p99
      $region22: #{up_conv_block.3} parent=11 // pred_check_branch
        %148 = sbr.rel (%p146) target = $region24
      $region23: #{up_conv_block.3} parent=11 // pred_region
        _
      $region24: #{up_conv_block.3} parent=11 // pred_fallthru
        _
    $region12: #{up_conv_block.3} parent=5 // pred_fallthru
      _
    %p149 = scmp.lt.s32.totalorder %s10, 4
    // Predicated region
    $region25: #{up_conv_block.3} parent=5 // pred_check
      %p150 = pneg %p149
    $region26: #{up_conv_block.3} parent=5 // pred_check_branch
      %152 = sbr.rel (%p150) target = $region28
    $region27: #{up_conv_block.3} parent=5 // pred_region
      // Predicated region
      $region29: #{up_conv_block.3} parent=27 // pred_check
        %p153 = pneg %p30
      $region30: #{up_conv_block.3} parent=27 // pred_check_branch
        %155 = sbr.rel (%p153) target = $region32
      $region31: #{up_conv_block.3} parent=27 // pred_region
        %p156 = scmp.lt.s32.totalorder %s10, 3
        %s157 = scalar_select %p156, %s10, 3
        %s158 = smul.addr %s157, 5
        %s159 = smul.addr %s158, 8
        %s160 = scalar_lea.vmem %s0, %s159
      $region32: #{up_conv_block.3} parent=27 // pred_fallthru
        _
    $region28: #{up_conv_block.3} parent=5 // pred_fallthru
      _
    %p161 = scmp.le.s32.totalorder 1, %s10
    %p162 = scmp.lt.s32.totalorder %s10, 5
    %p163 = pnand %p161, %p162
    %p164 = pneg %p163
    // Predicated region
    $region33: #{up_conv_block.3} parent=5 // pred_check
      _
    $region34: #{up_conv_block.3} parent=5 // pred_check_branch
      %166 = sbr.rel (%p163) target = $region36
    $region35: #{up_conv_block.3} parent=5 // pred_region
      %s167 = ssub.s32 %s10, 1
      %p168 = scmp.lt.s32.totalorder %s15, 3
      %s169 = scalar_select %p168, %s15, 3
      %s170 = smul.addr %s169, 5
      %s171 = smul.addr %s170, 8
      %s172 = scalar_lea.vmem %s0, %s171
      %p173 = pneg %p36
      %p174 = pneg %p33
      %p175 = pneg %p57
      %p176 = pneg %p54
      %p177 = pneg %p78
      %p178 = pneg %p75
      %p179 = pneg %p99
      %p180 = pneg %p96
      %p181 = pneg %p125
      %p182 = pneg %p122
      %p183 = scmp.lt.s32.totalorder %s15, 3
      %s184 = scalar_select %p183, %s15, 3
      %s185 = smul.addr %s184, 5
      %s186 = smul.addr %s185, 8
      %s187 = scalar_lea.vmem %s4, %s186
      %p188 = scmp.lt.s32.totalorder %s15, 3
      %s189 = scalar_select %p188, %s15, 3
      %s190 = smul.addr %s189, 5
      %s191 = smul.addr %s190, 8
      %s192 = scalar_lea.vmem %s0, %s191
      %p193 = scmp.lt.s32.totalorder %s15, 3
      %s194 = scalar_select %p193, %s15, 3
      %s195 = smul.addr %s194, 5
      %s196 = smul.addr %s195, 8
      %s197 = scalar_lea.vmem %s4, %s196
      %v198 = vld [vmem:[%s1] sm:$0xff]
      %v199 = vmul.f32 %v198, 0.00048828125
      %v200 = vmul.f32 %v199, %v199
      %202 = vrot.lane.b32.xlu0 %v200, 1
      %v203 = vpop.permute.xlu0 %202
      %v205 = vsub.f32 %v199, %v203
      %v206 = vadd.f32 %v205, 1e-05
      %v207 = vrsqrt.pop %v206
      %v208 = vld [vmem:[%s2] sm:$0xff]
      %210 = vrot.lane.b32.xlu0 %v207, 127
      %v211 = vpop.permute.xlu0 %210
      %v213 = vmul.f32 %v208, %v211
      %v214 = vld [vmem:[%s3] sm:$0xff]
      %v215 = vmul.f32 %v199, %v213
      %v216 = vsub.f32 %v214, %v215
      %v217 = vld [vmem:[%s192] sm:$0xff]
      %v218 = vld [vmem:[%s192 + $0x8] sm:$0xff]
      %v219 = vld [vmem:[%s192 + $0x10] sm:$0xff]
      %v220 = vld [vmem:[%s192 + $0x18] sm:$0xff]
      %v221 = vld [vmem:[%s192 + $0x20] sm:$0xff]
      %223 = vset.pattern.permute.xlu0 0
      %224 = vperm.xlu0 %223, %v213
      %v225 = vpop.permute.xlu0 %224
      %v227 = vmul.f32 %v217, %v225
      %v228 = vmul.f32 %v218, %v225
      %v229 = vmul.f32 %v219, %v225
      %v230 = vmul.f32 %v220, %v225
      %v231 = vmul.f32 %v221, %v225
      %233 = vset.pattern.permute.xlu0 0
      %234 = vperm.xlu0 %233, %v216
      %v235 = vpop.permute.xlu0 %234
      %v237 = vadd.f32 %v227, %v235
      %v238 = vadd.f32 %v228, %v235
      %v239 = vadd.f32 %v229, %v235
      %v240 = vadd.f32 %v230, %v235
      %v241 = vadd.f32 %v231, %v235
      %v242 = vmax.f32 %v237, 0.0
      %v243 = vmax.f32 %v238, 0.0
      %v244 = vmax.f32 %v239, 0.0
      %v245 = vmax.f32 %v240, 0.0
      %v246 = vmax.f32 %v241, 0.0
      %247 = vst [vmem:[%s197] sm:$0xff] %v242
      %248 = vst [vmem:[%s197 + $0x8] sm:$0xff] %v243
      %249 = vst [vmem:[%s197 + $0x10] sm:$0xff] %v244
      %250 = vst [vmem:[%s197 + $0x18] sm:$0xff] %v245
      %251 = vst [vmem:[%s197 + $0x20] sm:$0xff] %v246
      %p252 = scmp.lt.s32.totalorder %s15, 3
      %s253 = scalar_select %p252, %s15, 3
      %s254 = smul.addr %s253, 5
      %s255 = smul.addr %s254, 8
      %s256 = scalar_lea.vmem %s4, %s255
      // Predicated region
      $region37: #{up_conv_block.3} parent=35 // pred_check
        %p257 = pneg %p122
      $region38: #{up_conv_block.3} parent=35 // pred_check_branch
        %259 = sbr.rel (%p257) target = $region40
      $region39: #{up_conv_block.3} parent=35 // pred_region
        _
      $region40: #{up_conv_block.3} parent=35 // pred_fallthru
        _
    $region36: #{up_conv_block.3} parent=5 // pred_fallthru
      _
    %p260 = scmp.le.s32.totalorder 2, %s10
    // Predicated region
    $region41: #{up_conv_block.3} parent=5 // pred_check
      %p261 = pneg %p260
    $region42: #{up_conv_block.3} parent=5 // pred_check_branch
      %263 = sbr.rel (%p261) target = $region44
    $region43: #{up_conv_block.3} parent=5 // pred_region
      %s264 = ssub.s32 %s10, 2
      // Predicated region
      $region45: #{up_conv_block.3} parent=43 // pred_check
        %p265 = pneg %p128
      $region46: #{up_conv_block.3} parent=43 // pred_check_branch
        %267 = sbr.rel (%p265) target = $region48
      $region47: #{up_conv_block.3} parent=43 // pred_region
        %p268 = scmp.lt.s32.totalorder %s16, 3
        %s269 = scalar_select %p268, %s16, 3
        %s270 = smul.addr %s269, 5
        %s271 = smul.addr %s270, 8
        %s272 = scalar_lea.vmem %s4, %s271
      $region48: #{up_conv_block.3} parent=43 // pred_fallthru
        _
    $region44: #{up_conv_block.3} parent=5 // pred_fallthru
      _
  $region6: #{up_conv_block.3} parent=0 // loop_footer
    %s14 = sadd.s32 1, %s10
  $region7: #{up_conv_block.3} parent=0 // loop_footer_branch
    %9 = sbr.rel target = $region3
  $region8: #{up_conv_block.3} parent=0 // loop_exit
    _

// kernel: up_conv_block.2
$region0: #{up_conv_block.2}
  #allocation0 [shape = 'u32[]', space=smem, size = 0x4, offset = 0x4, fixed_abs, tag = 'smem constant byte address 0x4 - core index']
  #allocation1 [shape = 'u32[144,128]{1,0:T(1,128)}', space=vmem, size = 0x12000, scoped, tag = 'internal scratch']
  %s0 = inlined_call_operand.vmem [shape: f32[4,4,768], index: 0, kind: input, shape index: {}]
  %s1 = inlined_call_operand.vmem [shape: f32[9,8,4], index: 1, kind: input, shape index: {}]
  %s2 = inlined_call_operand.vmem [shape: f32[8,1], index: 2, kind: input, shape index: {}]
  %s3 = inlined_call_operand.vmem [shape: f32[1,640], index: 3, kind: input, shape index: {}]
  %s4 = inlined_call_operand.vmem [shape: f32[4,8,640], index: 4, kind: output, shape index: {0}]
  %s5 = inlined_call_operand.vmem [shape: f32[4,8,2], index: 5, kind: output, shape index: {1}]
  %6 = xla_tuple %s4, %s5
  %s7 = sld [smem:[#allocation0]]
  $region57: #{up_conv_block.2} parent=0
    _
  %s9 = ssub.s32 1, %s7
  %s10 = scalar_select 0, %s9, %s7
  loop: start=0, step=1, limit=6
  $region2: #{up_conv_block.2} parent=0 // loop_pre_header
    _
  $region3: #{up_conv_block.2} parent=0 // loop_header
    %s12 = sphi 0, %s16
    %p13 = scmp.ge.s32.totalorder %s12, 6
    %s22 = sphi 0, %s24
    %s25 = sphi 0, %s22
    %s26 = sphi 0, %s25
    %s42 = sphi 0, %s26
    %s46 = sphi 0, %s46
    %s48 = sphi 0, %s46
    %s49 = sphi 0, %s48
    %s63 = sphi 0, %s49
    %s67 = sphi 0, %s67
    %s69 = sphi 0, %s67
    %s70 = sphi 0, %s69
    %s84 = sphi 0, %s70
    %s88 = sphi 0, %s88
    %s90 = sphi 0, %s88
    %s91 = sphi 0, %s90
    %s105 = sphi 0, %s91
    %s111 = sphi 0, %s113
    %s114 = sphi 0, %s111
    %s115 = sphi 0, %s114
    %s131 = sphi 0, %s115
    %s137 = sphi 0, %s139
    %s140 = sphi 0, %s137
    %s141 = sphi 0, %s140
    %s157 = sphi 0, %s141
  $region4: #{up_conv_block.2} parent=0 // loop_header_branch
    %15 = sbr.rel (%p13) target = $region8
  $region5: #{up_conv_block.2} parent=0 // loop_body
    %s17 = ssub.s32 %s12, 1
    %s18 = ssub.s32 %s12, 2
    %s19 = sadd.s32 %s12, 1
    %s20 = ssub.s32 %s12, %s19
    %p21 = scmp.eq.s32.totalorder %s20, 0
    %s23 = sadd.s32 %s22, 1
    %s24 = scalar_select %p21, %s22, %s23
    %p27 = pneg %p21
    %p28 = scmp.eq.s32.totalorder %s12, 3
    %p29 = por %p27, %p28
    %p30 = scmp.ne.s32.totalorder %s22, %s25
    %p31 = scmp.eq.s32.totalorder %s12, 0
    %p32 = por %p30, %p31
    %p33 = scmp.ne.s32.totalorder %s22, %s25
    %p34 = scmp.eq.s32.totalorder %s17, 3
    %p35 = por %p33, %p34
    %p36 = scmp.ne.s32.totalorder %s25, %s26
    %p37 = scmp.eq.s32.totalorder %s17, 0
    %p38 = por %p36, %p37
    %p39 = scmp.ne.s32.totalorder %s25, %s26
    %p40 = scmp.eq.s32.totalorder %s18, 3
    %p41 = por %p39, %p40
    %p43 = scmp.ne.s32.totalorder %s26, %s42
    %p44 = scmp.eq.s32.totalorder %s18, 0
    %p45 = por %p43, %p44
    %s47 = sadd.s32 %s46, 1
    %p50 = scmp.eq.s32.totalorder %s12, 3
    %p51 = scmp.ne.s32.totalorder %s46, %s48
    %p52 = scmp.eq.s32.totalorder %s12, 0
    %p53 = por %p51, %p52
    %p54 = scmp.ne.s32.totalorder %s46, %s48
    %p55 = scmp.eq.s32.totalorder %s17, 3
    %p56 = por %p54, %p55
    %p57 = scmp.ne.s32.totalorder %s48, %s49
    %p58 = scmp.eq.s32.totalorder %s17, 0
    %p59 = por %p57, %p58
    %p60 = scmp.ne.s32.totalorder %s48, %s49
    %p61 = scmp.eq.s32.totalorder %s18, 3
    %p62 = por %p60, %p61
    %p64 = scmp.ne.s32.totalorder %s49, %s63
    %p65 = scmp.eq.s32.totalorder %s18, 0
    %p66 = por %p64, %p65
    %s68 = sadd.s32 %s67, 1
    %p71 = scmp.eq.s32.totalorder %s12, 3
    %p72 = scmp.ne.s32.totalorder %s67, %s69
    %p73 = scmp.eq.s32.totalorder %s12, 0
    %p74 = por %p72, %p73
    %p75 = scmp.ne.s32.totalorder %s67, %s69
    %p76 = scmp.eq.s32.totalorder %s17, 3
    %p77 = por %p75, %p76
    %p78 = scmp.ne.s32.totalorder %s69, %s70
    %p79 = scmp.eq.s32.totalorder %s17, 0
    %p80 = por %p78, %p79
    %p81 = scmp.ne.s32.totalorder %s69, %s70
    %p82 = scmp.eq.s32.totalorder %s18, 3
    %p83 = por %p81, %p82
    %p85 = scmp.ne.s32.totalorder %s70, %s84
    %p86 = scmp.eq.s32.totalorder %s18, 0
    %p87 = por %p85, %p86
    %s89 = sadd.s32 %s88, 1
    %p92 = scmp.eq.s32.totalorder %s12, 3
    %p93 = scmp.ne.s32.totalorder %s88, %s90
    %p94 = scmp.eq.s32.totalorder %s12, 0
    %p95 = por %p93, %p94
    %p96 = scmp.ne.s32.totalorder %s88, %s90
    %p97 = scmp.eq.s32.totalorder %s17, 3
    %p98 = por %p96, %p97
    %p99 = scmp.ne.s32.totalorder %s90, %s91
    %p100 = scmp.eq.s32.totalorder %s17, 0
    %p101 = por %p99, %p100
    %p102 = scmp.ne.s32.totalorder %s90, %s91
    %p103 = scmp.eq.s32.totalorder %s18, 3
    %p104 = por %p102, %p103
    %p106 = scmp.ne.s32.totalorder %s91, %s105
    %p107 = scmp.eq.s32.totalorder %s18, 0
    %p108 = por %p106, %p107
    %s109 = ssub.s32 %s12, %s19
    %p110 = scmp.eq.s32.totalorder %s109, 0
    %s112 = sadd.s32 %s111, 1
    %s113 = scalar_select %p110, %s111, %s112
    %p116 = pneg %p110
    %p117 = scmp.eq.s32.totalorder %s12, 3
    %p118 = por %p116, %p117
    %p119 = scmp.ne.s32.totalorder %s111, %s114
    %p120 = scmp.eq.s32.totalorder %s12, 0
    %p121 = por %p119, %p120
    %p122 = scmp.ne.s32.totalorder %s111, %s114
    %p123 = scmp.eq.s32.totalorder %s17, 3
    %p124 = por %p122, %p123
    %p125 = scmp.ne.s32.totalorder %s114, %s115
    %p126 = scmp.eq.s32.totalorder %s17, 0
    %p127 = por %p125, %p126
    %p128 = scmp.ne.s32.totalorder %s114, %s115
    %p129 = scmp.eq.s32.totalorder %s18, 3
    %p130 = por %p128, %p129
    %p132 = scmp.ne.s32.totalorder %s115, %s131
    %p133 = scmp.eq.s32.totalorder %s18, 0
    %p134 = por %p132, %p133
    %s135 = ssub.s32 %s12, %s19
    %p136 = scmp.eq.s32.totalorder %s135, 0
    %s138 = sadd.s32 %s137, 1
    %s139 = scalar_select %p136, %s137, %s138
    %p142 = pneg %p136
    %p143 = scmp.eq.s32.totalorder %s12, 3
    %p144 = por %p142, %p143
    %p145 = scmp.ne.s32.totalorder %s137, %s140
    %p146 = scmp.eq.s32.totalorder %s12, 0
    %p147 = por %p145, %p146
    %p148 = scmp.ne.s32.totalorder %s137, %s140
    %p149 = scmp.eq.s32.totalorder %s17, 3
    %p150 = por %p148, %p149
    %p151 = scmp.ne.s32.totalorder %s140, %s141
    %p152 = scmp.eq.s32.totalorder %s17, 0
    %p153 = por %p151, %p152
    %p154 = scmp.ne.s32.totalorder %s140, %s141
    %p155 = scmp.eq.s32.totalorder %s18, 3
    %p156 = por %p154, %p155
    %p158 = scmp.ne.s32.totalorder %s141, %s157
    %p159 = scmp.eq.s32.totalorder %s18, 0
    %p160 = por %p158, %p159
    %p161 = scmp.le.s32.totalorder 1, %s12
    %p162 = scmp.lt.s32.totalorder %s12, 5
    %p163 = pnand %p161, %p162
    %p164 = pneg %p163
    // Predicated region
    $region9: #{up_conv_block.2} parent=5 // pred_check
      _
    $region10: #{up_conv_block.2} parent=5 // pred_check_branch
      %166 = sbr.rel (%p163) target = $region12
    $region11: #{up_conv_block.2} parent=5 // pred_region
      %s167 = ssub.s32 %s12, 1
      // Predicated region
      $region13: #{up_conv_block.2} parent=11 // pred_check
        %p168 = pneg %p59
      $region14: #{up_conv_block.2} parent=11 // pred_check_branch
        %170 = sbr.rel (%p168) target = $region16
      $region15: #{up_conv_block.2} parent=11 // pred_region
        _
      $region16: #{up_conv_block.2} parent=11 // pred_fallthru
        _
      // Predicated region
      $region17: #{up_conv_block.2} parent=11 // pred_check
        %p171 = pneg %p80
      $region18: #{up_conv_block.2} parent=11 // pred_check_branch
        %173 = sbr.rel (%p171) target = $region20
      $region19: #{up_conv_block.2} parent=11 // pred_region
        _
      $region20: #{up_conv_block.2} parent=11 // pred_fallthru
        _
      // Predicated region
      $region21: #{up_conv_block.2} parent=11 // pred_check
        %p174 = pneg %p101
      $region22: #{up_conv_block.2} parent=11 // pred_check_branch
        %176 = sbr.rel (%p174) target = $region24
      $region23: #{up_conv_block.2} parent=11 // pred_region
        _
      $region24: #{up_conv_block.2} parent=11 // pred_fallthru
        _
    $region12: #{up_conv_block.2} parent=5 // pred_fallthru
      _
    %p177 = scmp.lt.s32.totalorder %s12, 4
    // Predicated region
    $region25: #{up_conv_block.2} parent=5 // pred_check
      %p178 = pneg %p177
    $region26: #{up_conv_block.2} parent=5 // pred_check_branch
      %180 = sbr.rel (%p178) target = $region28
    $region27: #{up_conv_block.2} parent=5 // pred_region
      // Predicated region
      $region29: #{up_conv_block.2} parent=27 // pred_check
        %p181 = pneg %p32
      $region30: #{up_conv_block.2} parent=27 // pred_check_branch
        %183 = sbr.rel (%p181) target = $region32
      $region31: #{up_conv_block.2} parent=27 // pred_region
        %p184 = scmp.lt.s32.totalorder %s12, 3
        %s185 = scalar_select %p184, %s12, 3
        %s186 = smul.addr %s185, 6
        %s187 = smul.addr %s186, 4
        %s188 = scalar_lea.vmem %s0, %s187
      $region32: #{up_conv_block.2} parent=27 // pred_fallthru
        _
    $region28: #{up_conv_block.2} parent=5 // pred_fallthru
      _
    %p189 = scmp.le.s32.totalorder 1, %s12
    %p190 = scmp.lt.s32.totalorder %s12, 5
    %p191 = pnand %p189, %p190
    %p192 = pneg %p191
    // Predicated region
    $region33: #{up_conv_block.2} parent=5 // pred_check
      _
    $region34: #{up_conv_block.2} parent=5 // pred_check_branch
      %194 = sbr.rel (%p191) target = $region36
    $region35: #{up_conv_block.2} parent=5 // pred_region
      %s195 = ssub.s32 %s12, 1
      %p196 = scmp.lt.s32.totalorder %s17, 3
      %s197 = scalar_select %p196, %s17, 3
      %s198 = smul.addr %s197, 6
      %s199 = smul.addr %s198, 4
      %s200 = scalar_lea.vmem %s0, %s199
      %p201 = pneg %p38
      %p202 = pneg %p35
      %p203 = pneg %p59
      %p204 = pneg %p56
      %p205 = pneg %p80
      %p206 = pneg %p77
      %p207 = pneg %p101
      %p208 = pneg %p98
      %p209 = pneg %p127
      %p210 = pneg %p124
      %p211 = scmp.lt.s32.totalorder %s17, 3
      %s212 = scalar_select %p211, %s17, 3
      %s213 = smul.addr %s212, 5
      %s214 = smul.addr %s213, 8
      %s215 = scalar_lea.vmem %s4, %s214
      %p216 = pneg %p153
      %p217 = pneg %p150
      %p218 = scmp.lt.s32.totalorder %s17, 3
      %s219 = scalar_select %p218, %s17, 3
      %s220 = smul.addr %s219, 8
      %s221 = scalar_lea.vmem %s5, %s220
      %p222 = scmp.lt.s32.totalorder %s17, 3
      %s223 = scalar_select %p222, %s17, 3
      %s224 = smul.addr %s223, 6
      %s225 = smul.addr %s224, 4
      %s226 = scalar_lea.vmem %s0, %s225
      %p227 = scmp.lt.s32.totalorder %s17, 3
      %s228 = scalar_select %p227, %s17, 3
      %s229 = smul.addr %s228, 5
      %s230 = smul.addr %s229, 8
      %s231 = scalar_lea.vmem %s4, %s230
      %p232 = scmp.lt.s32.totalorder %s17, 3
      %s233 = scalar_select %p232, %s17, 3
      %s234 = smul.addr %s233, 8
      %s235 = scalar_lea.vmem %s5, %s234
      %v236 = vld [vmem:[%s226] sm:$0xff]
      %v237 = vld [vmem:[%s226 + $0x8] sm:$0xff]
      %v238 = vld [vmem:[%s226 + $0x10] sm:$0xff]
      %v239 = vld [vmem:[%s1] sm:$0xff]
      %s240 = scalar_lea.vmem %s1, 8
      %v241 = vld [vmem:[%s240] sm:$0xff]
      %v245 = vcombine.high %v236, %v236
      %v246 = vcombine.high %v237, %v237
      %v247 = vcombine.high %v238, %v238
      %248 = vrot.lane.b32.xlu0 %v236, 127
      %v249 = vpop.permute.xlu0 %248
      %250 = vrot.lane.b32.xlu0 %v245, 127
      %v251 = vpop.permute.xlu0 %250
      %252 = vrot.lane.b32.xlu0 %v237, 127
      %v253 = vpop.permute.xlu0 %252
      %254 = vrot.lane.b32.xlu0 %v246, 127
      %v255 = vpop.permute.xlu0 %254
      %256 = vrot.lane.b32.xlu0 %v238, 127
      %v257 = vpop.permute.xlu0 %256
      %258 = vrot.lane.b32.xlu0 %v247, 127
      %v259 = vpop.permute.xlu0 %258
      %vm260 = vcmask 1039360
      %v261 = vsel %vm260, %v249, %v251
      %v262 = vsel %vm260, %v251, %v253
      %v263 = vsel %vm260, %v253, %v255
      %v264 = vsel %vm260, %v255, %v257
      %v265 = vsel %vm260, %v257, %v259
      %vm266 = vcmask 31744
      %v268 = vsel %vm266, %v241, 0
      %vm270 = vcmask 1043456
      %v271 = vsel %vm270, %v261, 0
      %v273 = vsel %vm270, %v262, 0
      %v275 = vsel %vm270, %v263, 0
      %v277 = vsel %vm270, %v264, 0
      %v279 = vsel %vm270, %v265, 0
      %281 = vmatprep.subr.mxu0 %v273
      %282 = vmatpush1.msra.mxu0 %v271
      %283 = vmatprep.subr.mxu0 0.0
      %284 = vmatpush1.msra.mxu0 0.0
      %285 = vmatprep.subr.mxu0 0.0
      %286 = vmatpush1.msra.mxu0 0.0
      %287 = vmatprep.subr.mxu0 0.0
      %288 = vmatpush1.msra.mxu0 0.0
      %289 = vmatprep.subr.mxu0 0.0
      %290 = vmatpush1.msra.mxu0 0.0
      %291 = vmatprep.subr.mxu0 0.0
      %292 = vmatpush1.msra.mxu0 0.0
      %293 = vmatprep.subr.mxu0 0.0
      %294 = vmatpush1.msra.mxu0 0.0
      %295 = vmatprep.subr.mxu0 0.0
      %296 = vmatpush1.msra.mxu0 0.0
      %297 = vmatprep.subr.mxu0 0.0
      %298 = vmatpush1.msra.mxu0 0.0
      %299 = vmatprep.subr.mxu0 0.0
      %300 = vmatpush1.msra.mxu0 0.0
      %301 = vmatprep.subr.mxu0 0.0
      %302 = vmatpush1.msra.mxu0 0.0
      %303 = vmatprep.subr.mxu0 0.0
      %304 = vmatpush1.msra.mxu0 0.0
      %305 = vmatprep.subr.mxu0 0.0
      %306 = vmatpush1.msra.mxu0 0.0
      %307 = vmatprep.subr.mxu0 0.0
      %308 = vmatpush1.msra.mxu0 0.0
      %309 = vmatprep.subr.mxu0 0.0
      %310 = vmatpush1.msra.mxu0 0.0
      %311 = vmatprep.subr.mxu0 0.0
      %312 = vmatpush1.msra.mxu0 0.0
      %313 = vmatprep.subr.mxu0 0.0
      %314 = vmatpush1.msra.mxu0 0.0
      %315 = vmatprep.subr.mxu0 0.0
      %316 = vmatpush1.msra.mxu0 0.0
      %317 = vmatprep.subr.mxu0 0.0
      %318 = vmatpush1.msra.mxu0 0.0
      %319 = vmatprep.subr.mxu0 0.0
      %320 = vmatpush1.msra.mxu0 0.0
      %321 = vmatprep.subr.mxu0 0.0
      %322 = vmatpush1.msra.mxu0 0.0
      %323 = vmatprep.subr.mxu0 0.0
      %324 = vmatpush1.msra.mxu0 0.0
      %325 = vmatprep.subr.mxu0 0.0
      %326 = vmatpush1.msra.mxu0 0.0
      %327 = vmatprep.subr.mxu0 0.0
      %328 = vmatpush1.msra.mxu0 0.0
      %329 = vmatprep.subr.mxu0 0.0
      %330 = vmatpush1.msra.mxu0 0.0
      %331 = vmatprep.subr.mxu0 0.0
      %332 = vmatpush1.msra.mxu0 0.0
      %333 = vmatprep.subr.mxu0 0.0
      %334 = vmatpush1.msra.mxu0 0.0
      %335 = vmatprep.subr.mxu0 0.0
      %336 = vmatpush1.msra.mxu0 0.0
      %337 = vmatprep.subr.mxu0 0.0
      %338 = vmatpush1.msra.mxu0 0.0
      %339 = vmatprep.subr.mxu0 0.0
      %340 = vmatpush1.msra.mxu0 0.0
      %341 = vmatprep.subr.mxu0 0.0
      %342 = vmatpush1.msra.mxu0 0.0
      %343 = vmatprep.subr.mxu0 0.0
      %344 = vmatpush1.msra.mxu0 0.0
      %345 = vmatprep.mubr.f32.mxu0 0.0
      %346 = vmatmul.mubr.f32.gmra.mrb[0].mxu0 %v268
      %v347 = vpop.f32.mrb[0].mxu0
      %v348 = vadd.f32 0.0, %v347
      %v349 = vpop.f32.mrb[0].mxu0
      %v350 = vadd.f32 0.0, %v349
      %351 = vdwg.mxu0
      %352 = vmatprep.subr.mxu0 %v277
      %353 = vmatpush1.msra.mxu0 %v275
      %354 = vmatprep.subr.mxu0 0.0
      %355 = vmatpush1.msra.mxu0 0.0
      %356 = vmatprep.subr.mxu0 0.0
      %357 = vmatpush1.msra.mxu0 0.0
      %358 = vmatprep.subr.mxu0 0.0
      %359 = vmatpush1.msra.mxu0 0.0
      %360 = vmatprep.subr.mxu0 0.0
      %361 = vmatpush1.msra.mxu0 0.0
      %362 = vmatprep.subr.mxu0 0.0
      %363 = vmatpush1.msra.mxu0 0.0
      %364 = vmatprep.subr.mxu0 0.0
      %365 = vmatpush1.msra.mxu0 0.0
      %366 = vmatprep.subr.mxu0 0.0
      %367 = vmatpush1.msra.mxu0 0.0
      %368 = vmatprep.subr.mxu0 0.0
      %369 = vmatpush1.msra.mxu0 0.0
      %370 = vmatprep.subr.mxu0 0.0
      %371 = vmatpush1.msra.mxu0 0.0
      %372 = vmatprep.subr.mxu0 0.0
      %373 = vmatpush1.msra.mxu0 0.0
      %374 = vmatprep.subr.mxu0 0.0
      %375 = vmatpush1.msra.mxu0 0.0
      %376 = vmatprep.subr.mxu0 0.0
      %377 = vmatpush1.msra.mxu0 0.0
      %378 = vmatprep.subr.mxu0 0.0
      %379 = vmatpush1.msra.mxu0 0.0
      %380 = vmatprep.subr.mxu0 0.0
      %381 = vmatpush1.msra.mxu0 0.0
      %382 = vmatprep.subr.mxu0 0.0
      %383 = vmatpush1.msra.mxu0 0.0
      %384 = vmatprep.subr.mxu0 0.0
      %385 = vmatpush1.msra.mxu0 0.0
      %386 = vmatprep.subr.mxu0 0.0
      %387 = vmatpush1.msra.mxu0 0.0
      %388 = vmatprep.subr.mxu0 0.0
      %389 = vmatpush1.msra.mxu0 0.0
      %390 = vmatprep.subr.mxu0 0.0
      %391 = vmatpush1.msra.mxu0 0.0
      %392 = vmatprep.subr.mxu0 0.0
      %393 = vmatpush1.msra.mxu0 0.0
      %394 = vmatprep.subr.mxu0 0.0
      %395 = vmatpush1.msra.mxu0 0.0
      %396 = vmatprep.subr.mxu0 0.0
      %397 = vmatpush1.msra.mxu0 0.0
      %398 = vmatprep.subr.mxu0 0.0
      %399 = vmatpush1.msra.mxu0 0.0
      %400 = vmatprep.subr.mxu0 0.0
      %401 = vmatpush1.msra.mxu0 0.0
      %402 = vmatprep.subr.mxu0 0.0
      %403 = vmatpush1.msra.mxu0 0.0
      %404 = vmatprep.subr.mxu0 0.0
      %405 = vmatpush1.msra.mxu0 0.0
      %406 = vmatprep.subr.mxu0 0.0
      %407 = vmatpush1.msra.mxu0 0.0
      %408 = vmatprep.subr.mxu0 0.0
      %409 = vmatpush1.msra.mxu0 0.0
      %410 = vmatprep.subr.mxu0 0.0
      %411 = vmatpush1.msra.mxu0 0.0
      %412 = vmatprep.subr.mxu0 0.0
      %413 = vmatpush1.msra.mxu0 0.0
      %414 = vmatprep.subr.mxu0 0.0
      %415 = vmatpush1.msra.mxu0 0.0
      %416 = vmatprep.mubr.f32.mxu0 0.0
      %417 = vmatmul.mubr.f32.gmra.mrb[0].mxu0 %v268
      %v418 = vpop.f32.mrb[0].mxu0
      %v419 = vadd.f32 0.0, %v418
      %v420 = vpop.f32.mrb[0].mxu0
      %v421 = vadd.f32 0.0, %v420
      %422 = vdwg.mxu0
      %423 = vmatprep.subr.mxu0 0.0
      %424 = vmatpush1.msra.mxu0 %v279
      %425 = vmatprep.subr.mxu0 0.0
      %426 = vmatpush1.msra.mxu0 0.0
      %427 = vmatprep.subr.mxu0 0.0
      %428 = vmatpush1.msra.mxu0 0.0
      %429 = vmatprep.subr.mxu0 0.0
      %430 = vmatpush1.msra.mxu0 0.0
      %431 = vmatprep.subr.mxu0 0.0
      %432 = vmatpush1.msra.mxu0 0.0
      %433 = vmatprep.subr.mxu0 0.0
      %434 = vmatpush1.msra.mxu0 0.0
      %435 = vmatprep.subr.mxu0 0.0
      %436 = vmatpush1.msra.mxu0 0.0
      %437 = vmatprep.subr.mxu0 0.0
      %438 = vmatpush1.msra.mxu0 0.0
      %439 = vmatprep.subr.mxu0 0.0
      %440 = vmatpush1.msra.mxu0 0.0
      %441 = vmatprep.subr.mxu0 0.0
      %442 = vmatpush1.msra.mxu0 0.0
      %443 = vmatprep.subr.mxu0 0.0
      %444 = vmatpush1.msra.mxu0 0.0
      %445 = vmatprep.subr.mxu0 0.0
      %446 = vmatpush1.msra.mxu0 0.0
      %447 = vmatprep.subr.mxu0 0.0
      %448 = vmatpush1.msra.mxu0 0.0
      %449 = vmatprep.subr.mxu0 0.0
      %450 = vmatpush1.msra.mxu0 0.0
      %451 = vmatprep.subr.mxu0 0.0
      %452 = vmatpush1.msra.mxu0 0.0
      %453 = vmatprep.subr.mxu0 0.0
      %454 = vmatpush1.msra.mxu0 0.0
      %455 = vmatprep.subr.mxu0 0.0
      %456 = vmatpush1.msra.mxu0 0.0
      %457 = vmatprep.subr.mxu0 0.0
      %458 = vmatpush1.msra.mxu0 0.0
      %459 = vmatprep.subr.mxu0 0.0
      %460 = vmatpush1.msra.mxu0 0.0
      %461 = vmatprep.subr.mxu0 0.0
      %462 = vmatpush1.msra.mxu0 0.0
      %463 = vmatprep.subr.mxu0 0.0
      %464 = vmatpush1.msra.mxu0 0.0
      %465 = vmatprep.subr.mxu0 0.0
      %466 = vmatpush1.msra.mxu0 0.0
      %467 = vmatprep.subr.mxu0 0.0
      %468 = vmatpush1.msra.mxu0 0.0
      %469 = vmatprep.subr.mxu0 0.0
      %470 = vmatpush1.msra.mxu0 0.0
      %471 = vmatprep.subr.mxu0 0.0
      %472 = vmatpush1.msra.mxu0 0.0
      %473 = vmatprep.subr.mxu0 0.0
      %474 = vmatpush1.msra.mxu0 0.0
      %475 = vmatprep.subr.mxu0 0.0
      %476 = vmatpush1.msra.mxu0 0.0
      %477 = vmatprep.subr.mxu0 0.0
      %478 = vmatpush1.msra.mxu0 0.0
      %479 = vmatprep.subr.mxu0 0.0
      %480 = vmatpush1.msra.mxu0 0.0
      %481 = vmatprep.subr.mxu0 0.0
      %482 = vmatpush1.msra.mxu0 0.0
      %483 = vmatprep.subr.mxu0 0.0
      %484 = vmatpush1.msra.mxu0 0.0
      %485 = vmatprep.subr.mxu0 0.0
      %486 = vmatpush1.msra.mxu0 0.0
      %487 = vmatprep.mubr.f32.mxu0 0.0
      %488 = vmatmul.mubr.f32.gmra.mrb[0].mxu0 %v268
      %v489 = vpop.f32.mrb[0].mxu0
      %v490 = vadd.f32 0.0, %v489
      %v491 = vpop.f32.mrb[0].mxu0
      %492 = vdwg.mxu0
      %v494 = vsel %vm266, %v239, 0
      %v496 = vsel %vm270, %v236, 0
      %v498 = vsel %vm270, %v245, 0
      %v500 = vsel %vm270, %v237, 0
      %v502 = vsel %vm270, %v246, 0
      %v504 = vsel %vm270, %v238, 0
      %506 = vmatprep.subr.mxu0 %v498
      %507 = vmatpush1.msra.mxu0 %v496
      %508 = vmatprep.subr.mxu0 0.0
      %509 = vmatpush1.msra.mxu0 0.0
      %510 = vmatprep.subr.mxu0 0.0
      %511 = vmatpush1.msra.mxu0 0.0
      %512 = vmatprep.subr.mxu0 0.0
      %513 = vmatpush1.msra.mxu0 0.0
      %514 = vmatprep.subr.mxu0 0.0
      %515 = vmatpush1.msra.mxu0 0.0
      %516 = vmatprep.subr.mxu0 0.0
      %517 = vmatpush1.msra.mxu0 0.0
      %518 = vmatprep.subr.mxu0 0.0
      %519 = vmatpush1.msra.mxu0 0.0
      %520 = vmatprep.subr.mxu0 0.0
      %521 = vmatpush1.msra.mxu0 0.0
      %522 = vmatprep.subr.mxu0 0.0
      %523 = vmatpush1.msra.mxu0 0.0
      %524 = vmatprep.subr.mxu0 0.0
      %525 = vmatpush1.msra.mxu0 0.0
      %526 = vmatprep.subr.mxu0 0.0
      %527 = vmatpush1.msra.mxu0 0.0
      %528 = vmatprep.subr.mxu0 0.0
      %529 = vmatpush1.msra.mxu0 0.0
      %530 = vmatprep.subr.mxu0 0.0
      %531 = vmatpush1.msra.mxu0 0.0
      %532 = vmatprep.subr.mxu0 0.0
      %533 = vmatpush1.msra.mxu0 0.0
      %534 = vmatprep.subr.mxu0 0.0
      %535 = vmatpush1.msra.mxu0 0.0
      %536 = vmatprep.subr.mxu0 0.0
      %537 = vmatpush1.msra.mxu0 0.0
      %538 = vmatprep.subr.mxu0 0.0
      %539 = vmatpush1.msra.mxu0 0.0
      %540 = vmatprep.subr.mxu0 0.0
      %541 = vmatpush1.msra.mxu0 0.0
      %542 = vmatprep.subr.mxu0 0.0
      %543 = vmatpush1.msra.mxu0 0.0
      %544 = vmatprep.subr.mxu0 0.0
      %545 = vmatpush1.msra.mxu0 0.0
      %546 = vmatprep.subr.mxu0 0.0
      %547 = vmatpush1.msra.mxu0 0.0
      %548 = vmatprep.subr.mxu0 0.0
      %549 = vmatpush1.msra.mxu0 0.0
      %550 = vmatprep.subr.mxu0 0.0
      %551 = vmatpush1.msra.mxu0 0.0
      %552 = vmatprep.subr.mxu0 0.0
      %553 = vmatpush1.msra.mxu0 0.0
      %554 = vmatprep.subr.mxu0 0.0
      %555 = vmatpush1.msra.mxu0 0.0
      %556 = vmatprep.subr.mxu0 0.0
      %557 = vmatpush1.msra.mxu0 0.0
      %558 = vmatprep.subr.mxu0 0.0
      %559 = vmatpush1.msra.mxu0 0.0
      %560 = vmatprep.subr.mxu0 0.0
      %561 = vmatpush1.msra.mxu0 0.0
      %562 = vmatprep.subr.mxu0 0.0
      %563 = vmatpush1.msra.mxu0 0.0
      %564 = vmatprep.subr.mxu0 0.0
      %565 = vmatpush1.msra.mxu0 0.0
      %566 = vmatprep.subr.mxu0 0.0
      %567 = vmatpush1.msra.mxu0 0.0
      %568 = vmatprep.subr.mxu0 0.0
      %569 = vmatpush1.msra.mxu0 0.0
      %570 = vmatprep.mubr.f32.mxu0 0.0
      %571 = vmatmul.mubr.f32.gmra.mrb[0].mxu0 %v494
      %v572 = vpop.f32.mrb[0].mxu0
      %v573 = vadd.f32 %v348, %v572
      %v574 = vpop.f32.mrb[0].mxu0
      %v575 = vadd.f32 %v350, %v574
      %576 = vdwg.mxu0
      %577 = vmatprep.subr.mxu0 %v502
      %578 = vmatpush1.msra.mxu0 %v500
      %579 = vmatprep.subr.mxu0 0.0
      %580 = vmatpush1.msra.mxu0 0.0
      %581 = vmatprep.subr.mxu0 0.0
      %582 = vmatpush1.msra.mxu0 0.0
      %583 = vmatprep.subr.mxu0 0.0
      %584 = vmatpush1.msra.mxu0 0.0
      %585 = vmatprep.subr.mxu0 0.0
      %586 = vmatpush1.msra.mxu0 0.0
      %587 = vmatprep.subr.mxu0 0.0
      %588 = vmatpush1.msra.mxu0 0.0
      %589 = vmatprep.subr.mxu0 0.0
      %590 = vmatpush1.msra.mxu0 0.0
      %591 = vmatprep.subr.mxu0 0.0
      %592 = vmatpush1.msra.mxu0 0.0
      %593 = vmatprep.subr.mxu0 0.0
      %594 = vmatpush1.msra.mxu0 0.0
      %595 = vmatprep.subr.mxu0 0.0
      %596 = vmatpush1.msra.mxu0 0.0
      %597 = vmatprep.subr.mxu0 0.0
      %598 = vmatpush1.msra.mxu0 0.0
      %599 = vmatprep.subr.mxu0 0.0
      %600 = vmatpush1.msra.mxu0 0.0
      %601 = vmatprep.subr.mxu0 0.0
      %602 = vmatpush1.msra.mxu0 0.0
      %603 = vmatprep.subr.mxu0 0.0
      %604 = vmatpush1.msra.mxu0 0.0
      %605 = vmatprep.subr.mxu0 0.0
      %606 = vmatpush1.msra.mxu0 0.0
      %607 = vmatprep.subr.mxu0 0.0
      %608 = vmatpush1.msra.mxu0 0.0
      %609 = vmatprep.subr.mxu0 0.0
      %610 = vmatpush1.msra.mxu0 0.0
      %611 = vmatprep.subr.mxu0 0.0
      %612 = vmatpush1.msra.mxu0 0.0
      %613 = vmatprep.subr.mxu0 0.0
      %614 = vmatpush1.msra.mxu0 0.0
      %615 = vmatprep.subr.mxu0 0.0
      %616 = vmatpush1.msra.mxu0 0.0
      %617 = vmatprep.subr.mxu0 0.0
      %618 = vmatpush1.msra.mxu0 0.0
      %619 = vmatprep.subr.mxu0 0.0
      %620 = vmatpush1.msra.mxu0 0.0
      %621 = vmatprep.subr.mxu0 0.0
      %622 = vmatpush1.msra.mxu0 0.0
      %623 = vmatprep.subr.mxu0 0.0
      %624 = vmatpush1.msra.mxu0 0.0
      %625 = vmatprep.subr.mxu0 0.0
      %626 = vmatpush1.msra.mxu0 0.0
      %627 = vmatprep.subr.mxu0 0.0
      %628 = vmatpush1.msra.mxu0 0.0
      %629 = vmatprep.subr.mxu0 0.0
      %630 = vmatpush1.msra.mxu0 0.0
      %631 = vmatprep.subr.mxu0 0.0
      %632 = vmatpush1.msra.mxu0 0.0
      %633 = vmatprep.subr.mxu0 0.0
      %634 = vmatpush1.msra.mxu0 0.0
      %635 = vmatprep.subr.mxu0 0.0
      %636 = vmatpush1.msra.mxu0 0.0
      %637 = vmatprep.subr.mxu0 0.0
      %638 = vmatpush1.msra.mxu0 0.0
      %639 = vmatprep.subr.mxu0 0.0
      %640 = vmatpush1.msra.mxu0 0.0
      %641 = vmatprep.mubr.f32.mxu0 0.0
      %642 = vmatmul.mubr.f32.gmra.mrb[0].mxu0 %v494
      %v643 = vpop.f32.mrb[0].mxu0
      %v644 = vadd.f32 %v419, %v643
      %v645 = vpop.f32.mrb[0].mxu0
      %v646 = vadd.f32 %v421, %v645
      %647 = vdwg.mxu0
      %648 = vmatprep.subr.mxu0 0.0
      %649 = vmatpush1.msra.mxu0 %v504
      %650 = vmatprep.subr.mxu0 0.0
      %651 = vmatpush1.msra.mxu0 0.0
      %652 = vmatprep.subr.mxu0 0.0
      %653 = vmatpush1.msra.mxu0 0.0
      %654 = vmatprep.subr.mxu0 0.0
      %655 = vmatpush1.msra.mxu0 0.0
      %656 = vmatprep.subr.mxu0 0.0
      %657 = vmatpush1.msra.mxu0 0.0
      %658 = vmatprep.subr.mxu0 0.0
      %659 = vmatpush1.msra.mxu0 0.0
      %660 = vmatprep.subr.mxu0 0.0
      %661 = vmatpush1.msra.mxu0 0.0
      %662 = vmatprep.subr.mxu0 0.0
      %663 = vmatpush1.msra.mxu0 0.0
      %664 = vmatprep.subr.mxu0 0.0
      %665 = vmatpush1.msra.mxu0 0.0
      %666 = vmatprep.subr.mxu0 0.0
      %667 = vmatpush1.msra.mxu0 0.0
      %668 = vmatprep.subr.mxu0 0.0
      %669 = vmatpush1.msra.mxu0 0.0
      %670 = vmatprep.subr.mxu0 0.0
      %671 = vmatpush1.msra.mxu0 0.0
      %672 = vmatprep.subr.mxu0 0.0
      %673 = vmatpush1.msra.mxu0 0.0
      %674 = vmatprep.subr.mxu0 0.0
      %675 = vmatpush1.msra.mxu0 0.0
      %676 = vmatprep.subr.mxu0 0.0
      %677 = vmatpush1.msra.mxu0 0.0
      %678 = vmatprep.subr.mxu0 0.0
      %679 = vmatpush1.msra.mxu0 0.0
      %680 = vmatprep.subr.mxu0 0.0
      %681 = vmatpush1.msra.mxu0 0.0
      %682 = vmatprep.subr.mxu0 0.0
      %683 = vmatpush1.msra.mxu0 0.0
      %684 = vmatprep.subr.mxu0 0.0
      %685 = vmatpush1.msra.mxu0 0.0
      %686 = vmatprep.subr.mxu0 0.0
      %687 = vmatpush1.msra.mxu0 0.0
      %688 = vmatprep.subr.mxu0 0.0
      %689 = vmatpush1.msra.mxu0 0.0
      %690 = vmatprep.subr.mxu0 0.0
      %691 = vmatpush1.msra.mxu0 0.0
      %692 = vmatprep.subr.mxu0 0.0
      %693 = vmatpush1.msra.mxu0 0.0
      %694 = vmatprep.subr.mxu0 0.0
      %695 = vmatpush1.msra.mxu0 0.0
      %696 = vmatprep.subr.mxu0 0.0
      %697 = vmatpush1.msra.mxu0 0.0
      %698 = vmatprep.subr.mxu0 0.0
      %699 = vmatpush1.msra.mxu0 0.0
      %700 = vmatprep.subr.mxu0 0.0
      %701 = vmatpush1.msra.mxu0 0.0
      %702 = vmatprep.subr.mxu0 0.0
      %703 = vmatpush1.msra.mxu0 0.0
      %704 = vmatprep.subr.mxu0 0.0
      %705 = vmatpush1.msra.mxu0 0.0
      %706 = vmatprep.subr.mxu0 0.0
      %707 = vmatpush1.msra.mxu0 0.0
      %708 = vmatprep.subr.mxu0 0.0
      %709 = vmatpush1.msra.mxu0 0.0
      %710 = vmatprep.subr.mxu0 0.0
      %711 = vmatpush1.msra.mxu0 0.0
      %712 = vmatprep.mubr.f32.mxu0 0.0
      %713 = vmatmul.mubr.f32.gmra.mrb[0].mxu0 %v494
      %v714 = vpop.f32.mrb[0].mxu0
      %v715 = vadd.f32 %v490, %v714
      %v716 = vpop.f32.mrb[0].mxu0
      %717 = vdwg.mxu0
      %s718 = scalar_lea.vmem %s1, 16
      %v719 = vld [vmem:[%s718] sm:$0xff]
      %720 = vrot.lane.b32.xlu0 %v236, 126
      %v721 = vpop.permute.xlu0 %720
      %722 = vrot.lane.b32.xlu0 %v245, 126
      %v723 = vpop.permute.xlu0 %722
      %724 = vrot.lane.b32.xlu0 %v237, 126
      %v725 = vpop.permute.xlu0 %724
      %726 = vrot.lane.b32.xlu0 %v246, 126
      %v727 = vpop.permute.xlu0 %726
      %728 = vrot.lane.b32.xlu0 %v238, 126
      %v729 = vpop.permute.xlu0 %728
      %730 = vrot.lane.b32.xlu0 %v247, 126
      %v731 = vpop.permute.xlu0 %730
      %vm732 = vcmask 1031168
      %v733 = vsel %vm732, %v721, %v723
      %v734 = vsel %vm732, %v723, %v725
      %v735 = vsel %vm732, %v725, %v727
      %v736 = vsel %vm732, %v727, %v729
      %v737 = vsel %vm732, %v729, %v731
      %v739 = vsel %vm266, %v719, 0
      %v741 = vsel %vm270, %v733, 0
      %v743 = vsel %vm270, %v734, 0
      %v745 = vsel %vm270, %v735, 0
      %v747 = vsel %vm270, %v736, 0
      %v749 = vsel %vm270, %v737, 0
      %751 = vmatprep.subr.mxu0 %v743
      %752 = vmatpush1.msra.mxu0 %v741
      %753 = vmatprep.subr.mxu0 0.0
      %754 = vmatpush1.msra.mxu0 0.0
      %755 = vmatprep.subr.mxu0 0.0
      %756 = vmatpush1.msra.mxu0 0.0
      %757 = vmatprep.subr.mxu0 0.0
      %758 = vmatpush1.msra.mxu0 0.0
      %759 = vmatprep.subr.mxu0 0.0
      %760 = vmatpush1.msra.mxu0 0.0
      %761 = vmatprep.subr.mxu0 0.0
      %762 = vmatpush1.msra.mxu0 0.0
      %763 = vmatprep.subr.mxu0 0.0
      %764 = vmatpush1.msra.mxu0 0.0
      %765 = vmatprep.subr.mxu0 0.0
      %766 = vmatpush1.msra.mxu0 0.0
      %767 = vmatprep.subr.mxu0 0.0
      %768 = vmatpush1.msra.mxu0 0.0
      %769 = vmatprep.subr.mxu0 0.0
      %770 = vmatpush1.msra.mxu0 0.0
      %771 = vmatprep.subr.mxu0 0.0
      %772 = vmatpush1.msra.mxu0 0.0
      %773 = vmatprep.subr.mxu0 0.0
      %774 = vmatpush1.msra.mxu0 0.0
      %775 = vmatprep.subr.mxu0 0.0
      %776 = vmatpush1.msra.mxu0 0.0
      %777 = vmatprep.subr.mxu0 0.0
      %778 = vmatpush1.msra.mxu0 0.0
      %779 = vmatprep.subr.mxu0 0.0
      %780 = vmatpush1.msra.mxu0 0.0
      %781 = vmatprep.subr.mxu0 0.0
      %782 = vmatpush1.msra.mxu0 0.0
      %783 = vmatprep.subr.mxu0 0.0
      %784 = vmatpush1.msra.mxu0 0.0
      %785 = vmatprep.subr.mxu0 0.0
      %786 = vmatpush1.msra.mxu0 0.0
      %787 = vmatprep.subr.mxu0 0.0
      %788 = vmatpush1.msra.mxu0 0.0
      %789 = vmatprep.subr.mxu0 0.0
      %790 = vmatpush1.msra.mxu0 0.0
      %791 = vmatprep.subr.mxu0 0.0
      %792 = vmatpush1.msra.mxu0 0.0
      %793 = vmatprep.subr.mxu0 0.0
      %794 = vmatpush1.msra.mxu0 0.0
      %795 = vmatprep.subr.mxu0 0.0
      %796 = vmatpush1.msra.mxu0 0.0
      %797 = vmatprep.subr.mxu0 0.0
      %798 = vmatpush1.msra.mxu0 0.0
      %799 = vmatprep.subr.mxu0 0.0
      %800 = vmatpush1.msra.mxu0 0.0
      %801 = vmatprep.subr.mxu0 0.0
      %802 = vmatpush1.msra.mxu0 0.0
      %803 = vmatprep.subr.mxu0 0.0
      %804 = vmatpush1.msra.mxu0 0.0
      %805 = vmatprep.subr.mxu0 0.0
      %806 = vmatpush1.msra.mxu0 0.0
      %807 = vmatprep.subr.mxu0 0.0
      %808 = vmatpush1.msra.mxu0 0.0
      %809 = vmatprep.subr.mxu0 0.0
      %810 = vmatpush1.msra.mxu0 0.0
      %811 = vmatprep.subr.mxu0 0.0
      %812 = vmatpush1.msra.mxu0 0.0
      %813 = vmatprep.subr.mxu0 0.0
      %814 = vmatpush1.msra.mxu0 0.0
      %815 = vmatprep.mubr.f32.mxu0 0.0
      %816 = vmatmul.mubr.f32.gmra.mrb[0].mxu0 %v739
      %v817 = vpop.f32.mrb[0].mxu0
      %v818 = vadd.f32 0.0, %v817
      %v819 = vpop.f32.mrb[0].mxu0
      %v820 = vadd.f32 0.0, %v819
      %821 = vdwg.mxu0
      %822 = vmatprep.subr.mxu0 %v747
      %823 = vmatpush1.msra.mxu0 %v745
      %824 = vmatprep.subr.mxu0 0.0
      %825 = vmatpush1.msra.mxu0 0.0
      %826 = vmatprep.subr.mxu0 0.0
      %827 = vmatpush1.msra.mxu0 0.0
      %828 = vmatprep.subr.mxu0 0.0
      %829 = vmatpush1.msra.mxu0 0.0
      %830 = vmatprep.subr.mxu0 0.0
      %831 = vmatpush1.msra.mxu0 0.0
      %832 = vmatprep.subr.mxu0 0.0
      %833 = vmatpush1.msra.mxu0 0.0
      %834 = vmatprep.subr.mxu0 0.0
      %835 = vmatpush1.msra.mxu0 0.0
      %836 = vmatprep.subr.mxu0 0.0
      %837 = vmatpush1.msra.mxu0 0.0
      %838 = vmatprep.subr.mxu0 0.0
      %839 = vmatpush1.msra.mxu0 0.0
      %840 = vmatprep.subr.mxu0 0.0
      %841 = vmatpush1.msra.mxu0 0.0
      %842 = vmatprep.subr.mxu0 0.0
      %843 = vmatpush1.msra.mxu0 0.0
      %844 = vmatprep.subr.mxu0 0.0
      %845 = vmatpush1.msra.mxu0 0.0
      %846 = vmatprep.subr.mxu0 0.0
      %847 = vmatpush1.msra.mxu0 0.0
      %848 = vmatprep.subr.mxu0 0.0
      %849 = vmatpush1.msra.mxu0 0.0
      %850 = vmatprep.subr.mxu0 0.0
      %851 = vmatpush1.msra.mxu0 0.0
      %852 = vmatprep.subr.mxu0 0.0
      %853 = vmatpush1.msra.mxu0 0.0
      %854 = vmatprep.subr.mxu0 0.0
      %855 = vmatpush1.msra.mxu0 0.0
      %856 = vmatprep.subr.mxu0 0.0
      %857 = vmatpush1.msra.mxu0 0.0
      %858 = vmatprep.subr.mxu0 0.0
      %859 = vmatpush1.msra.mxu0 0.0
      %860 = vmatprep.subr.mxu0 0.0
      %861 = vmatpush1.msra.mxu0 0.0
      %862 = vmatprep.subr.mxu0 0.0
      %863 = vmatpush1.msra.mxu0 0.0
      %864 = vmatprep.subr.mxu0 0.0
      %865 = vmatpush1.msra.mxu0 0.0
      %866 = vmatprep.subr.mxu0 0.0
      %867 = vmatpush1.msra.mxu0 0.0
      %868 = vmatprep.subr.mxu0 0.0
      %869 = vmatpush1.msra.mxu0 0.0
      %870 = vmatprep.subr.mxu0 0.0
      %871 = vmatpush1.msra.mxu0 0.0
      %872 = vmatprep.subr.mxu0 0.0
      %873 = vmatpush1.msra.mxu0 0.0
      %874 = vmatprep.subr.mxu0 0.0
      %875 = vmatpush1.msra.mxu0 0.0
      %876 = vmatprep.subr.mxu0 0.0
      %877 = vmatpush1.msra.mxu0 0.0
      %878 = vmatprep.subr.mxu0 0.0
      %879 = vmatpush1.msra.mxu0 0.0
      %880 = vmatprep.subr.mxu0 0.0
      %881 = vmatpush1.msra.mxu0 0.0
      %882 = vmatprep.subr.mxu0 0.0
      %883 = vmatpush1.msra.mxu0 0.0
      %884 = vmatprep.subr.mxu0 0.0
      %885 = vmatpush1.msra.mxu0 0.0
      %886 = vmatprep.mubr.f32.mxu0 0.0
      %887 = vmatmul.mubr.f32.gmra.mrb[0].mxu0 %v739
      %v888 = vpop.f32.mrb[0].mxu0
      %v889 = vadd.f32 0.0, %v888
      %v890 = vpop.f32.mrb[0].mxu0
      %v891 = vadd.f32 0.0, %v890
      %892 = vdwg.mxu0
      %893 = vmatprep.subr.mxu0 0.0
      %894 = vmatpush1.msra.mxu0 %v749
      %895 = vmatprep.subr.mxu0 0.0
      %896 = vmatpush1.msra.mxu0 0.0
      %897 = vmatprep.subr.mxu0 0.0
      %898 = vmatpush1.msra.mxu0 0.0
      %899 = vmatprep.subr.mxu0 0.0
      %900 = vmatpush1.msra.mxu0 0.0
      %901 = vmatprep.subr.mxu0 0.0
      %902 = vmatpush1.msra.mxu0 0.0
      %903 = vmatprep.subr.mxu0 0.0
      %904 = vmatpush1.msra.mxu0 0.0
      %905 = vmatprep.subr.mxu0 0.0
      %906 = vmatpush1.msra.mxu0 0.0
      %907 = vmatprep.subr.mxu0 0.0
      %908 = vmatpush1.msra.mxu0 0.0
      %909 = vmatprep.subr.mxu0 0.0
      %910 = vmatpush1.msra.mxu0 0.0
      %911 = vmatprep.subr.mxu0 0.0
      %912 = vmatpush1.msra.mxu0 0.0
      %913 = vmatprep.subr.mxu0 0.0
      %914 = vmatpush1.msra.mxu0 0.0
      %915 = vmatprep.subr.mxu0 0.0
      %916 = vmatpush1.msra.mxu0 0.0
      %917 = vmatprep.subr.mxu0 0.0
      %918 = vmatpush1.msra.mxu0 0.0
      %919 = vmatprep.subr.mxu0 0.0
      %920 = vmatpush1.msra.mxu0 0.0
      %921 = vmatprep.subr.mxu0 0.0
      %922 = vmatpush1.msra.mxu0 0.0
      %923 = vmatprep.subr.mxu0 0.0
      %924 = vmatpush1.msra.mxu0 0.0
      %925 = vmatprep.subr.mxu0 0.0
      %926 = vmatpush1.msra.mxu0 0.0
      %927 = vmatprep.subr.mxu0 0.0
      %928 = vmatpush1.msra.mxu0 0.0
      %929 = vmatprep.subr.mxu0 0.0
      %930 = vmatpush1.msra.mxu0 0.0
      %931 = vmatprep.subr.mxu0 0.0
      %932 = vmatpush1.msra.mxu0 0.0
      %933 = vmatprep.subr.mxu0 0.0
      %934 = vmatpush1.msra.mxu0 0.0
      %935 = vmatprep.subr.mxu0 0.0
      %936 = vmatpush1.msra.mxu0 0.0
      %937 = vmatprep.subr.mxu0 0.0
      %938 = vmatpush1.msra.mxu0 0.0
      %939 = vmatprep.subr.mxu0 0.0
      %940 = vmatpush1.msra.mxu0 0.0
      %941 = vmatprep.subr.mxu0 0.0
      %942 = vmatpush1.msra.mxu0 0.0
      %943 = vmatprep.subr.mxu0 0.0
      %944 = vmatpush1.msra.mxu0 0.0
      %945 = vmatprep.subr.mxu0 0.0
      %946 = vmatpush1.msra.mxu0 0.0
      %947 = vmatprep.subr.mxu0 0.0
      %948 = vmatpush1.msra.mxu0 0.0
      %949 = vmatprep.subr.mxu0 0.0
      %950 = vmatpush1.msra.mxu0 0.0
      %951 = vmatprep.subr.mxu0 0.0
      %952 = vmatpush1.msra.mxu0 0.0
      %953 = vmatprep.subr.mxu0 0.0
      %954 = vmatpush1.msra.mxu0 0.0
      %955 = vmatprep.subr.mxu0 0.0
      %956 = vmatpush1.msra.mxu0 0.0
      %957 = vmatprep.mubr.f32.mxu0 0.0
      %958 = vmatmul.mubr.f32.gmra.mrb[0].mxu0 %v739
      %v959 = vpop.f32.mrb[0].mxu0
      %v960 = vadd.f32 0.0, %v959
      %v961 = vpop.f32.mrb[0].mxu0
      %962 = vdwg.mxu0
      %v963 = vadd.f32 %v573, %v818
      %v964 = vadd.f32 %v575, %v820
      %v965 = vadd.f32 %v644, %v889
      %v966 = vadd.f32 %v646, %v891
      %v967 = vadd.f32 %v715, %v960
      %s968 = scalar_lea.vmem %s1, 24
      %v969 = vld [vmem:[%s968] sm:$0xff]
      %970 = vrot.lane.b32.xlu0 %v236, 88
      %v971 = vpop.permute.xlu0 %970
      %972 = vrot.lane.b32.xlu0 %v245, 88
      %v973 = vpop.permute.xlu0 %972
      %974 = vrot.lane.b32.xlu0 %v237, 88
      %v975 = vpop.permute.xlu0 %974
      %976 = vrot.lane.b32.xlu0 %v246, 88
      %v977 = vpop.permute.xlu0 %976
      %978 = vrot.lane.b32.xlu0 %v238, 88
      %v979 = vpop.permute.xlu0 %978
      %980 = vrot.lane.b32.xlu0 %v247, 88
      %v981 = vpop.permute.xlu0 %980
      %vm982 = vcmask 719872
      %v983 = vsel %vm982, %v971, %v973
      %v984 = vsel %vm982, %v973, %v975
      %v985 = vsel %vm982, %v975, %v977
      %v986 = vsel %vm982, %v977, %v979
      %v987 = vsel %vm982, %v979, %v981
      %v989 = vsel %vm266, %v969, 0
      %v991 = vsel %vm270, %v983, 0
      %v993 = vsel %vm270, %v984, 0
      %v995 = vsel %vm270, %v985, 0
      %v997 = vsel %vm270, %v986, 0
      %v999 = vsel %vm270, %v987, 0
      %1001 = vmatprep.subr.mxu0 %v993
      %1002 = vmatpush1.msra.mxu0 %v991
      %1003 = vmatprep.subr.mxu0 0.0
      %1004 = vmatpush1.msra.mxu0 0.0
      %1005 = vmatprep.subr.mxu0 0.0
      %1006 = vmatpush1.msra.mxu0 0.0
      %1007 = vmatprep.subr.mxu0 0.0
      %1008 = vmatpush1.msra.mxu0 0.0
      %1009 = vmatprep.subr.mxu0 0.0
      %1010 = vmatpush1.msra.mxu0 0.0
      %1011 = vmatprep.subr.mxu0 0.0
      %1012 = vmatpush1.msra.mxu0 0.0
      %1013 = vmatprep.subr.mxu0 0.0
      %1014 = vmatpush1.msra.mxu0 0.0
      %1015 = vmatprep.subr.mxu0 0.0
      %1016 = vmatpush1.msra.mxu0 0.0
      %1017 = vmatprep.subr.mxu0 0.0
      %1018 = vmatpush1.msra.mxu0 0.0
      %1019 = vmatprep.subr.mxu0 0.0
      %1020 = vmatpush1.msra.mxu0 0.0
      %1021 = vmatprep.subr.mxu0 0.0
      %1022 = vmatpush1.msra.mxu0 0.0
      %1023 = vmatprep.subr.mxu0 0.0
      %1024 = vmatpush1.msra.mxu0 0.0
      %1025 = vmatprep.subr.mxu0 0.0
      %1026 = vmatpush1.msra.mxu0 0.0
      %1027 = vmatprep.subr.mxu0 0.0
      %1028 = vmatpush1.msra.mxu0 0.0
      %1029 = vmatprep.subr.mxu0 0.0
      %1030 = vmatpush1.msra.mxu0 0.0
      %1031 = vmatprep.subr.mxu0 0.0
      %1032 = vmatpush1.msra.mxu0 0.0
      %1033 = vmatprep.subr.mxu0 0.0
      %1034 = vmatpush1.msra.mxu0 0.0
      %1035 = vmatprep.subr.mxu0 0.0
      %1036 = vmatpush1.msra.mxu0 0.0
      %1037 = vmatprep.subr.mxu0 0.0
      %1038 = vmatpush1.msra.mxu0 0.0
      %1039 = vmatprep.subr.mxu0 0.0
      %1040 = vmatpush1.msra.mxu0 0.0
      %1041 = vmatprep.subr.mxu0 0.0
      %1042 = vmatpush1.msra.mxu0 0.0
      %1043 = vmatprep.subr.mxu0 0.0
      %1044 = vmatpush1.msra.mxu0 0.0
      %1045 = vmatprep.subr.mxu0 0.0
      %1046 = vmatpush1.msra.mxu0 0.0
      %1047 = vmatprep.subr.mxu0 0.0
      %1048 = vmatpush1.msra.mxu0 0.0
      %1049 = vmatprep.subr.mxu0 0.0
      %1050 = vmatpush1.msra.mxu0 0.0
      %1051 = vmatprep.subr.mxu0 0.0
      %1052 = vmatpush1.msra.mxu0 0.0
      %1053 = vmatprep.subr.mxu0 0.0
      %1054 = vmatpush1.msra.mxu0 0.0
      %1055 = vmatprep.subr.mxu0 0.0
      %1056 = vmatpush1.msra.mxu0 0.0
      %1057 = vmatprep.subr.mxu0 0.0
      %1058 = vmatpush1.msra.mxu0 0.0
      %1059 = vmatprep.subr.mxu0 0.0
      %1060 = vmatpush1.msra.mxu0 0.0
      %1061 = vmatprep.subr.mxu0 0.0
      %1062 = vmatpush1.msra.mxu0 0.0
      %1063 = vmatprep.subr.mxu0 0.0
      %1064 = vmatpush1.msra.mxu0 0.0
      %1065 = vmatprep.mubr.f32.mxu0 0.0
      %1066 = vmatmul.mubr.f32.gmra.mrb[0].mxu0 %v989
      %v1067 = vpop.f32.mrb[0].mxu0
      %v1068 = vadd.f32 0.0, %v1067
      %v1069 = vpop.f32.mrb[0].mxu0
      %v1070 = vadd.f32 0.0, %v1069
      %1071 = vdwg.mxu0
      %1072 = vmatprep.subr.mxu0 %v997
      %1073 = vmatpush1.msra.mxu0 %v995
      %1074 = vmatprep.subr.mxu0 0.0
      %1075 = vmatpush1.msra.mxu0 0.0
      %1076 = vmatprep.subr.mxu0 0.0
      %1077 = vmatpush1.msra.mxu0 0.0
      %1078 = vmatprep.subr.mxu0 0.0
      %1079 = vmatpush1.msra.mxu0 0.0
      %1080 = vmatprep.subr.mxu0 0.0
      %1081 = vmatpush1.msra.mxu0 0.0
      %1082 = vmatprep.subr.mxu0 0.0
      %1083 = vmatpush1.msra.mxu0 0.0
      %1084 = vmatprep.subr.mxu0 0.0
      %1085 = vmatpush1.msra.mxu0 0.0
      %1086 = vmatprep.subr.mxu0 0.0
      %1087 = vmatpush1.msra.mxu0 0.0
      %1088 = vmatprep.subr.mxu0 0.0
      %1089 = vmatpush1.msra.mxu0 0.0
      %1090 = vmatprep.subr.mxu0 0.0
      %1091 = vmatpush1.msra.mxu0 0.0
      %1092 = vmatprep.subr.mxu0 0.0
      %1093 = vmatpush1.msra.mxu0 0.0
      %1094 = vmatprep.subr.mxu0 0.0
      %1095 = vmatpush1.msra.mxu0 0.0
      %1096 = vmatprep.subr.mxu0 0.0
      %1097 = vmatpush1.msra.mxu0 0.0
      %1098 = vmatprep.subr.mxu0 0.0
      %1099 = vmatpush1.msra.mxu0 0.0
      %1100 = vmatprep.subr.mxu0 0.0
      %1101 = vmatpush1.msra.mxu0 0.0
      %1102 = vmatprep.subr.mxu0 0.0
      %1103 = vmatpush1.msra.mxu0 0.0
      %1104 = vmatprep.subr.mxu0 0.0
      %1105 = vmatpush1.msra.mxu0 0.0
      %1106 = vmatprep.subr.mxu0 0.0
      %1107 = vmatpush1.msra.mxu0 0.0
      %1108 = vmatprep.subr.mxu0 0.0
      %1109 = vmatpush1.msra.mxu0 0.0
      %1110 = vmatprep.subr.mxu0 0.0
      %1111 = vmatpush1.msra.mxu0 0.0
      %1112 = vmatprep.subr.mxu0 0.0
      %1113 = vmatpush1.msra.mxu0 0.0
      %1114 = vmatprep.subr.mxu0 0.0
      %1115 = vmatpush1.msra.mxu0 0.0
      %1116 = vmatprep.subr.mxu0 0.0
      %1117 = vmatpush1.msra.mxu0 0.0
      %1118 = vmatprep.subr.mxu0 0.0
      %1119 = vmatpush1.msra.mxu0 0.0
      %1120 = vmatprep.subr.mxu0 0.0
      %1121 = vmatpush1.msra.mxu0 0.0
      %1122 = vmatprep.subr.mxu0 0.0
      %1123 = vmatpush1.msra.mxu0 0.0
      %1124 = vmatprep.subr.mxu0 0.0
      %1125 = vmatpush1.msra.mxu0 0.0
      %1126 = vmatprep.subr.mxu0 0.0
      %1127 = vmatpush1.msra.mxu0 0.0
      %1128 = vmatprep.subr.mxu0 0.0
      %1129 = vmatpush1.msra.mxu0 0.0
      %1130 = vmatprep.subr.mxu0 0.0
      %1131 = vmatpush1.msra.mxu0 0.0
      %1132 = vmatprep.subr.mxu0 0.0
      %1133 = vmatpush1.msra.mxu0 0.0
      %1134 = vmatprep.subr.mxu0 0.0
      %1135 = vmatpush1.msra.mxu0 0.0
      %1136 = vmatprep.mubr.f32.mxu0 0.0
      %1137 = vmatmul.mubr.f32.gmra.mrb[0].mxu0 %v989
      %v1138 = vpop.f32.mrb[0].mxu0
      %v1139 = vadd.f32 0.0, %v1138
      %v1140 = vpop.f32.mrb[0].mxu0
      %v1141 = vadd.f32 0.0, %v1140
      %1142 = vdwg.mxu0
      %1143 = vmatprep.subr.mxu0 0.0
      %1144 = vmatpush1.msra.mxu0 %v999
      %1145 = vmatprep.subr.mxu0 0.0
      %1146 = vmatpush1.msra.mxu0 0.0
      %1147 = vmatprep.subr.mxu0 0.0
      %1148 = vmatpush1.msra.mxu0 0.0
      %1149 = vmatprep.subr.mxu0 0.0
      %1150 = vmatpush1.msra.mxu0 0.0
      %1151 = vmatprep.subr.mxu0 0.0
      %1152 = vmatpush1.msra.mxu0 0.0
      %1153 = vmatprep.subr.mxu0 0.0
      %1154 = vmatpush1.msra.mxu0 0.0
      %1155 = vmatprep.subr.mxu0 0.0
      %1156 = vmatpush1.msra.mxu0 0.0
      %1157 = vmatprep.subr.mxu0 0.0
      %1158 = vmatpush1.msra.mxu0 0.0
      %1159 = vmatprep.subr.mxu0 0.0
      %1160 = vmatpush1.msra.mxu0 0.0
      %1161 = vmatprep.subr.mxu0 0.0
      %1162 = vmatpush1.msra.mxu0 0.0
      %1163 = vmatprep.subr.mxu0 0.0
      %1164 = vmatpush1.msra.mxu0 0.0
      %1165 = vmatprep.subr.mxu0 0.0
      %1166 = vmatpush1.msra.mxu0 0.0
      %1167 = vmatprep.subr.mxu0 0.0
      %1168 = vmatpush1.msra.mxu0 0.0
      %1169 = vmatprep.subr.mxu0 0.0
      %1170 = vmatpush1.msra.mxu0 0.0
      %1171 = vmatprep.subr.mxu0 0.0
      %1172 = vmatpush1.msra.mxu0 0.0
      %1173 = vmatprep.subr.mxu0 0.0
      %1174 = vmatpush1.msra.mxu0 0.0
      %1175 = vmatprep.subr.mxu0 0.0
      %1176 = vmatpush1.msra.mxu0 0.0
      %1177 = vmatprep.subr.mxu0 0.0
      %1178 = vmatpush1.msra.mxu0 0.0
      %1179 = vmatprep.subr.mxu0 0.0
      %1180 = vmatpush1.msra.mxu0 0.0
      %1181 = vmatprep.subr.mxu0 0.0
      %1182 = vmatpush1.msra.mxu0 0.0
      %1183 = vmatprep.subr.mxu0 0.0
      %1184 = vmatpush1.msra.mxu0 0.0
      %1185 = vmatprep.subr.mxu0 0.0
      %1186 = vmatpush1.msra.mxu0 0.0
      %1187 = vmatprep.subr.mxu0 0.0
      %1188 = vmatpush1.msra.mxu0 0.0
      %1189 = vmatprep.subr.mxu0 0.0
      %1190 = vmatpush1.msra.mxu0 0.0
      %1191 = vmatprep.subr.mxu0 0.0
      %1192 = vmatpush1.msra.mxu0 0.0
      %1193 = vmatprep.subr.mxu0 0.0
      %1194 = vmatpush1.msra.mxu0 0.0
      %1195 = vmatprep.subr.mxu0 0.0
      %1196 = vmatpush1.msra.mxu0 0.0
      %1197 = vmatprep.subr.mxu0 0.0
      %1198 = vmatpush1.msra.mxu0 0.0
      %1199 = vmatprep.subr.mxu0 0.0
      %1200 = vmatpush1.msra.mxu0 0.0
      %1201 = vmatprep.subr.mxu0 0.0
      %1202 = vmatpush1.msra.mxu0 0.0
      %1203 = vmatprep.subr.mxu0 0.0
      %1204 = vmatpush1.msra.mxu0 0.0
      %1205 = vmatprep.subr.mxu0 0.0
      %1206 = vmatpush1.msra.mxu0 0.0
      %1207 = vmatprep.mubr.f32.mxu0 0.0
      %1208 = vmatmul.mubr.f32.gmra.mrb[0].mxu0 %v989
      %v1209 = vpop.f32.mrb[0].mxu0
      %v1210 = vadd.f32 0.0, %v1209
      %v1211 = vpop.f32.mrb[0].mxu0
      %1212 = vdwg.mxu0
      %v1213 = vadd.f32 %v963, %v1068
      %v1214 = vadd.f32 %v964, %v1070
      %v1215 = vadd.f32 %v965, %v1139
      %v1216 = vadd.f32 %v966, %v1141
      %v1217 = vadd.f32 %v967, %v1210
      %s1218 = scalar_lea.vmem %s1, 32
      %v1219 = vld [vmem:[%s1218] sm:$0xff]
      %1220 = vrot.lane.b32.xlu0 %v236, 87
      %v1221 = vpop.permute.xlu0 %1220
      %1222 = vrot.lane.b32.xlu0 %v245, 87
      %v1223 = vpop.permute.xlu0 %1222
      %1224 = vrot.lane.b32.xlu0 %v237, 87
      %v1225 = vpop.permute.xlu0 %1224
      %1226 = vrot.lane.b32.xlu0 %v246, 87
      %v1227 = vpop.permute.xlu0 %1226
      %1228 = vrot.lane.b32.xlu0 %v238, 87
      %v1229 = vpop.permute.xlu0 %1228
      %1230 = vrot.lane.b32.xlu0 %v247, 87
      %v1231 = vpop.permute.xlu0 %1230
      %vm1232 = vcmask 711680
      %v1233 = vsel %vm1232, %v1221, %v1223
      %v1234 = vsel %vm1232, %v1223, %v1225
      %v1235 = vsel %vm1232, %v1225, %v1227
      %v1236 = vsel %vm1232, %v1227, %v1229
      %v1237 = vsel %vm1232, %v1229, %v1231
      %v1239 = vsel %vm266, %v1219, 0
      %v1241 = vsel %vm270, %v1233, 0
      %v1243 = vsel %vm270, %v1234, 0
      %v1245 = vsel %vm270, %v1235, 0
      %v1247 = vsel %vm270, %v1236, 0
      %v1249 = vsel %vm270, %v1237, 0
      %1251 = vmatprep.subr.mxu0 %v1243
      %1252 = vmatpush1.msra.mxu0 %v1241
      %1253 = vmatprep.subr.mxu0 0.0
      %1254 = vmatpush1.msra.mxu0 0.0
      %1255 = vmatprep.subr.mxu0 0.0
      %1256 = vmatpush1.msra.mxu0 0.0
      %1257 = vmatprep.subr.mxu0 0.0
      %1258 = vmatpush1.msra.mxu0 0.0
      %1259 = vmatprep.subr.mxu0 0.0
      %1260 = vmatpush1.msra.mxu0 0.0
      %1261 = vmatprep.subr.mxu0 0.0
      %1262 = vmatpush1.msra.mxu0 0.0
      %1263 = vmatprep.subr.mxu0 0.0
      %1264 = vmatpush1.msra.mxu0 0.0
      %1265 = vmatprep.subr.mxu0 0.0
      %1266 = vmatpush1.msra.mxu0 0.0
      %1267 = vmatprep.subr.mxu0 0.0
      %1268 = vmatpush1.msra.mxu0 0.0
      %1269 = vmatprep.subr.mxu0 0.0
      %1270 = vmatpush1.msra.mxu0 0.0
      %1271 = vmatprep.subr.mxu0 0.0
      %1272 = vmatpush1.msra.mxu0 0.0
      %1273 = vmatprep.subr.mxu0 0.0
      %1274 = vmatpush1.msra.mxu0 0.0
      %1275 = vmatprep.subr.mxu0 0.0
      %1276 = vmatpush1.msra.mxu0 0.0
      %1277 = vmatprep.subr.mxu0 0.0
      %1278 = vmatpush1.msra.mxu0 0.0
      %1279 = vmatprep.subr.mxu0 0.0
      %1280 = vmatpush1.msra.mxu0 0.0
      %1281 = vmatprep.subr.mxu0 0.0
      %1282 = vmatpush1.msra.mxu0 0.0
      %1283 = vmatprep.subr.mxu0 0.0
      %1284 = vmatpush1.msra.mxu0 0.0
      %1285 = vmatprep.subr.mxu0 0.0
      %1286 = vmatpush1.msra.mxu0 0.0
      %1287 = vmatprep.subr.mxu0 0.0
      %1288 = vmatpush1.msra.mxu0 0.0
      %1289 = vmatprep.subr.mxu0 0.0
      %1290 = vmatpush1.msra.mxu0 0.0
      %1291 = vmatprep.subr.mxu0 0.0
      %1292 = vmatpush1.msra.mxu0 0.0
      %1293 = vmatprep.subr.mxu0 0.0
      %1294 = vmatpush1.msra.mxu0 0.0
      %1295 = vmatprep.subr.mxu0 0.0
      %1296 = vmatpush1.msra.mxu0 0.0
      %1297 = vmatprep.subr.mxu0 0.0
      %1298 = vmatpush1.msra.mxu0 0.0
      %1299 = vmatprep.subr.mxu0 0.0
      %1300 = vmatpush1.msra.mxu0 0.0
      %1301 = vmatprep.subr.mxu0 0.0
      %1302 = vmatpush1.msra.mxu0 0.0
      %1303 = vmatprep.subr.mxu0 0.0
      %1304 = vmatpush1.msra.mxu0 0.0
      %1305 = vmatprep.subr.mxu0 0.0
      %1306 = vmatpush1.msra.mxu0 0.0
      %1307 = vmatprep.subr.mxu0 0.0
      %1308 = vmatpush1.msra.mxu0 0.0
      %1309 = vmatprep.subr.mxu0 0.0
      %1310 = vmatpush1.msra.mxu0 0.0
      %1311 = vmatprep.subr.mxu0 0.0
      %1312 = vmatpush1.msra.mxu0 0.0
      %1313 = vmatprep.subr.mxu0 0.0
      %1314 = vmatpush1.msra.mxu0 0.0
      %1315 = vmatprep.mubr.f32.mxu0 0.0
      %1316 = vmatmul.mubr.f32.gmra.mrb[0].mxu0 %v1239
      %v1317 = vpop.f32.mrb[0].mxu0
      %v1318 = vadd.f32 0.0, %v1317
      %v1319 = vpop.f32.mrb[0].mxu0
      %v1320 = vadd.f32 0.0, %v1319
      %1321 = vdwg.mxu0
      %1322 = vmatprep.subr.mxu0 %v1247
      %1323 = vmatpush1.msra.mxu0 %v1245
      %1324 = vmatprep.subr.mxu0 0.0
      %1325 = vmatpush1.msra.mxu0 0.0
      %1326 = vmatprep.subr.mxu0 0.0
      %1327 = vmatpush1.msra.mxu0 0.0
      %1328 = vmatprep.subr.mxu0 0.0
      %1329 = vmatpush1.msra.mxu0 0.0
      %1330 = vmatprep.subr.mxu0 0.0
      %1331 = vmatpush1.msra.mxu0 0.0
      %1332 = vmatprep.subr.mxu0 0.0
      %1333 = vmatpush1.msra.mxu0 0.0
      %1334 = vmatprep.subr.mxu0 0.0
      %1335 = vmatpush1.msra.mxu0 0.0
      %1336 = vmatprep.subr.mxu0 0.0
      %1337 = vmatpush1.msra.mxu0 0.0
      %1338 = vmatprep.subr.mxu0 0.0
      %1339 = vmatpush1.msra.mxu0 0.0
      %1340 = vmatprep.subr.mxu0 0.0
      %1341 = vmatpush1.msra.mxu0 0.0
      %1342 = vmatprep.subr.mxu0 0.0
      %1343 = vmatpush1.msra.mxu0 0.0
      %1344 = vmatprep.subr.mxu0 0.0
      %1345 = vmatpush1.msra.mxu0 0.0
      %1346 = vmatprep.subr.mxu0 0.0
      %1347 = vmatpush1.msra.mxu0 0.0
      %1348 = vmatprep.subr.mxu0 0.0
      %1349 = vmatpush1.msra.mxu0 0.0
      %1350 = vmatprep.subr.mxu0 0.0
      %1351 = vmatpush1.msra.mxu0 0.0
      %1352 = vmatprep.subr.mxu0 0.0
      %1353 = vmatpush1.msra.mxu0 0.0
      %1354 = vmatprep.subr.mxu0 0.0
      %1355 = vmatpush1.msra.mxu0 0.0
      %1356 = vmatprep.subr.mxu0 0.0
      %1357 = vmatpush1.msra.mxu0 0.0
      %1358 = vmatprep.subr.mxu0 0.0
      %1359 = vmatpush1.msra.mxu0 0.0
      %1360 = vmatprep.subr.mxu0 0.0
      %1361 = vmatpush1.msra.mxu0 0.0
      %1362 = vmatprep.subr.mxu0 0.0
      %1363 = vmatpush1.msra.mxu0 0.0
      %1364 = vmatprep.subr.mxu0 0.0
      %1365 = vmatpush1.msra.mxu0 0.0
      %1366 = vmatprep.subr.mxu0 0.0
      %1367 = vmatpush1.msra.mxu0 0.0
      %1368 = vmatprep.subr.mxu0 0.0
      %1369 = vmatpush1.msra.mxu0 0.0
      %1370 = vmatprep.subr.mxu0 0.0
      %1371 = vmatpush1.msra.mxu0 0.0
      %1372 = vmatprep.subr.mxu0 0.0
      %1373 = vmatpush1.msra.mxu0 0.0
      %1374 = vmatprep.subr.mxu0 0.0
      %1375 = vmatpush1.msra.mxu0 0.0
      %1376 = vmatprep.subr.mxu0 0.0
      %1377 = vmatpush1.msra.mxu0 0.0
      %1378 = vmatprep.subr.mxu0 0.0
      %1379 = vmatpush1.msra.mxu0 0.0
      %1380 = vmatprep.subr.mxu0 0.0
      %1381 = vmatpush1.msra.mxu0 0.0
      %1382 = vmatprep.subr.mxu0 0.0
      %1383 = vmatpush1.msra.mxu0 0.0
      %1384 = vmatprep.subr.mxu0 0.0
      %1385 = vmatpush1.msra.mxu0 0.0
      %1386 = vmatprep.mubr.f32.mxu0 0.0
      %1387 = vmatmul.mubr.f32.gmra.mrb[0].mxu0 %v1239
      %v1388 = vpop.f32.mrb[0].mxu0
      %v1389 = vadd.f32 0.0, %v1388
      %v1390 = vpop.f32.mrb[0].mxu0
      %v1391 = vadd.f32 0.0, %v1390
      %1392 = vdwg.mxu0
      %1393 = vmatprep.subr.mxu0 0.0
      %1394 = vmatpush1.msra.mxu0 %v1249
      %1395 = vmatprep.subr.mxu0 0.0
      %1396 = vmatpush1.msra.mxu0 0.0
      %1397 = vmatprep.subr.mxu0 0.0
      %1398 = vmatpush1.msra.mxu0 0.0
      %1399 = vmatprep.subr.mxu0 0.0
      %1400 = vmatpush1.msra.mxu0 0.0
      %1401 = vmatprep.subr.mxu0 0.0
      %1402 = vmatpush1.msra.mxu0 0.0
      %1403 = vmatprep.subr.mxu0 0.0
      %1404 = vmatpush1.msra.mxu0 0.0
      %1405 = vmatprep.subr.mxu0 0.0
      %1406 = vmatpush1.msra.mxu0 0.0
      %1407 = vmatprep.subr.mxu0 0.0
      %1408 = vmatpush1.msra.mxu0 0.0
      %1409 = vmatprep.subr.mxu0 0.0
      %1410 = vmatpush1.msra.mxu0 0.0
      %1411 = vmatprep.subr.mxu0 0.0
      %1412 = vmatpush1.msra.mxu0 0.0
      %1413 = vmatprep.subr.mxu0 0.0
      %1414 = vmatpush1.msra.mxu0 0.0
      %1415 = vmatprep.subr.mxu0 0.0
      %1416 = vmatpush1.msra.mxu0 0.0
      %1417 = vmatprep.subr.mxu0 0.0
      %1418 = vmatpush1.msra.mxu0 0.0
      %1419 = vmatprep.subr.mxu0 0.0
      %1420 = vmatpush1.msra.mxu0 0.0
      %1421 = vmatprep.subr.mxu0 0.0
      %1422 = vmatpush1.msra.mxu0 0.0
      %1423 = vmatprep.subr.mxu0 0.0
      %1424 = vmatpush1.msra.mxu0 0.0
      %1425 = vmatprep.subr.mxu0 0.0
      %1426 = vmatpush1.msra.mxu0 0.0
      %1427 = vmatprep.subr.mxu0 0.0
      %1428 = vmatpush1.msra.mxu0 0.0
      %1429 = vmatprep.subr.mxu0 0.0
      %1430 = vmatpush1.msra.mxu0 0.0
      %1431 = vmatprep.subr.mxu0 0.0
      %1432 = vmatpush1.msra.mxu0 0.0
      %1433 = vmatprep.subr.mxu0 0.0
      %1434 = vmatpush1.msra.mxu0 0.0
      %1435 = vmatprep.subr.mxu0 0.0
      %1436 = vmatpush1.msra.mxu0 0.0
      %1437 = vmatprep.subr.mxu0 0.0
      %1438 = vmatpush1.msra.mxu0 0.0
      %1439 = vmatprep.subr.mxu0 0.0
      %1440 = vmatpush1.msra.mxu0 0.0
      %1441 = vmatprep.subr.mxu0 0.0
      %1442 = vmatpush1.msra.mxu0 0.0
      %1443 = vmatprep.subr.mxu0 0.0
      %1444 = vmatpush1.msra.mxu0 0.0
      %1445 = vmatprep.subr.mxu0 0.0
      %1446 = vmatpush1.msra.mxu0 0.0
      %1447 = vmatprep.subr.mxu0 0.0
      %1448 = vmatpush1.msra.mxu0 0.0
      %1449 = vmatprep.subr.mxu0 0.0
      %1450 = vmatpush1.msra.mxu0 0.0
      %1451 = vmatprep.subr.mxu0 0.0
      %1452 = vmatpush1.msra.mxu0 0.0
      %1453 = vmatprep.subr.mxu0 0.0
      %1454 = vmatpush1.msra.mxu0 0.0
      %1455 = vmatprep.subr.mxu0 0.0
      %1456 = vmatpush1.msra.mxu0 0.0
      %1457 = vmatprep.mubr.f32.mxu0 0.0
      %1458 = vmatmul.mubr.f32.gmra.mrb[0].mxu0 %v1239
      %v1459 = vpop.f32.mrb[0].mxu0
      %v1460 = vadd.f32 0.0, %v1459
      %v1461 = vpop.f32.mrb[0].mxu0
      %1462 = vdwg.mxu0
      %v1463 = vadd.f32 %v1213, %v1318
      %v1464 = vadd.f32 %v1214, %v1320
      %v1465 = vadd.f32 %v1215, %v1389
      %v1466 = vadd.f32 %v1216, %v1391
      %v1467 = vadd.f32 %v1217, %v1460
      %s1468 = scalar_lea.vmem %s1, 40
      %v1469 = vld [vmem:[%s1468] sm:$0xff]
      %1470 = vrot.lane.b32.xlu0 %v236, 86
      %v1471 = vpop.permute.xlu0 %1470
      %1472 = vrot.lane.b32.xlu0 %v245, 86
      %v1473 = vpop.permute.xlu0 %1472
      %1474 = vrot.lane.b32.xlu0 %v237, 86
      %v1475 = vpop.permute.xlu0 %1474
      %1476 = vrot.lane.b32.xlu0 %v246, 86
      %v1477 = vpop.permute.xlu0 %1476
      %1478 = vrot.lane.b32.xlu0 %v238, 86
      %v1479 = vpop.permute.xlu0 %1478
      %1480 = vrot.lane.b32.xlu0 %v247, 86
      %v1481 = vpop.permute.xlu0 %1480
      %vm1482 = vcmask 703488
      %v1483 = vsel %vm1482, %v1471, %v1473
      %v1484 = vsel %vm1482, %v1473, %v1475
      %v1485 = vsel %vm1482, %v1475, %v1477
      %v1486 = vsel %vm1482, %v1477, %v1479
      %v1487 = vsel %vm1482, %v1479, %v1481
      %v1489 = vsel %vm266, %v1469, 0
      %v1491 = vsel %vm270, %v1483, 0
      %v1493 = vsel %vm270, %v1484, 0
      %v1495 = vsel %vm270, %v1485, 0
      %v1497 = vsel %vm270, %v1486, 0
      %v1499 = vsel %vm270, %v1487, 0
      %1501 = vmatprep.subr.mxu0 %v1493
      %1502 = vmatpush1.msra.mxu0 %v1491
      %1503 = vmatprep.subr.mxu0 0.0
      %1504 = vmatpush1.msra.mxu0 0.0
      %1505 = vmatprep.subr.mxu0 0.0
      %1506 = vmatpush1.msra.mxu0 0.0
      %1507 = vmatprep.subr.mxu0 0.0
      %1508 = vmatpush1.msra.mxu0 0.0
      %1509 = vmatprep.subr.mxu0 0.0
      %1510 = vmatpush1.msra.mxu0 0.0
      %1511 = vmatprep.subr.mxu0 0.0
      %1512 = vmatpush1.msra.mxu0 0.0
      %1513 = vmatprep.subr.mxu0 0.0
      %1514 = vmatpush1.msra.mxu0 0.0
      %1515 = vmatprep.subr.mxu0 0.0
      %1516 = vmatpush1.msra.mxu0 0.0
      %1517 = vmatprep.subr.mxu0 0.0
      %1518 = vmatpush1.msra.mxu0 0.0
      %1519 = vmatprep.subr.mxu0 0.0
      %1520 = vmatpush1.msra.mxu0 0.0
      %1521 = vmatprep.subr.mxu0 0.0
      %1522 = vmatpush1.msra.mxu0 0.0
      %1523 = vmatprep.subr.mxu0 0.0
      %1524 = vmatpush1.msra.mxu0 0.0
      %1525 = vmatprep.subr.mxu0 0.0
      %1526 = vmatpush1.msra.mxu0 0.0
      %1527 = vmatprep.subr.mxu0 0.0
      %1528 = vmatpush1.msra.mxu0 0.0
      %1529 = vmatprep.subr.mxu0 0.0
      %1530 = vmatpush1.msra.mxu0 0.0
      %1531 = vmatprep.subr.mxu0 0.0
      %1532 = vmatpush1.msra.mxu0 0.0
      %1533 = vmatprep.subr.mxu0 0.0
      %1534 = vmatpush1.msra.mxu0 0.0
      %1535 = vmatprep.subr.mxu0 0.0
      %1536 = vmatpush1.msra.mxu0 0.0
      %1537 = vmatprep.subr.mxu0 0.0
      %1538 = vmatpush1.msra.mxu0 0.0
      %1539 = vmatprep.subr.mxu0 0.0
      %1540 = vmatpush1.msra.mxu0 0.0
      %1541 = vmatprep.subr.mxu0 0.0
      %1542 = vmatpush1.msra.mxu0 0.0
      %1543 = vmatprep.subr.mxu0 0.0
      %1544 = vmatpush1.msra.mxu0 0.0
      %1545 = vmatprep.subr.mxu0 0.0
      %1546 = vmatpush1.msra.mxu0 0.0
      %1547 = vmatprep.subr.mxu0 0.0
      %1548 = vmatpush1.msra.mxu0 0.0
      %1549 = vmatprep.subr.mxu0 0.0
      %1550 = vmatpush1.msra.mxu0 0.0
      %1551 = vmatprep.subr.mxu0 0.0
      %1552 = vmatpush1.msra.mxu0 0.0
      %1553 = vmatprep.subr.mxu0 0.0
      %1554 = vmatpush1.msra.mxu0 0.0
      %1555 = vmatprep.subr.mxu0 0.0
      %1556 = vmatpush1.msra.mxu0 0.0
      %1557 = vmatprep.subr.mxu0 0.0
      %1558 = vmatpush1.msra.mxu0 0.0
      %1559 = vmatprep.subr.mxu0 0.0
      %1560 = vmatpush1.msra.mxu0 0.0
      %1561 = vmatprep.subr.mxu0 0.0
      %1562 = vmatpush1.msra.mxu0 0.0
      %1563 = vmatprep.subr.mxu0 0.0
      %1564 = vmatpush1.msra.mxu0 0.0
      %1565 = vmatprep.mubr.f32.mxu0 0.0
      %1566 = vmatmul.mubr.f32.gmra.mrb[0].mxu0 %v1489
      %v1567 = vpop.f32.mrb[0].mxu0
      %v1568 = vadd.f32 0.0, %v1567
      %v1569 = vpop.f32.mrb[0].mxu0
      %v1570 = vadd.f32 0.0, %v1569
      %1571 = vdwg.mxu0
      %1572 = vmatprep.subr.mxu0 %v1497
      %1573 = vmatpush1.msra.mxu0 %v1495
      %1574 = vmatprep.subr.mxu0 0.0
      %1575 = vmatpush1.msra.mxu0 0.0
      %1576 = vmatprep.subr.mxu0 0.0
      %1577 = vmatpush1.msra.mxu0 0.0
      %1578 = vmatprep.subr.mxu0 0.0
      %1579 = vmatpush1.msra.mxu0 0.0
      %1580 = vmatprep.subr.mxu0 0.0
      %1581 = vmatpush1.msra.mxu0 0.0
      %1582 = vmatprep.subr.mxu0 0.0
      %1583 = vmatpush1.msra.mxu0 0.0
      %1584 = vmatprep.subr.mxu0 0.0
      %1585 = vmatpush1.msra.mxu0 0.0
      %1586 = vmatprep.subr.mxu0 0.0
      %1587 = vmatpush1.msra.mxu0 0.0
      %1588 = vmatprep.subr.mxu0 0.0
      %1589 = vmatpush1.msra.mxu0 0.0
      %1590 = vmatprep.subr.mxu0 0.0
      %1591 = vmatpush1.msra.mxu0 0.0
      %1592 = vmatprep.subr.mxu0 0.0
      %1593 = vmatpush1.msra.mxu0 0.0
      %1594 = vmatprep.subr.mxu0 0.0
      %1595 = vmatpush1.msra.mxu0 0.0
      %1596 = vmatprep.subr.mxu0 0.0
      %1597 = vmatpush1.msra.mxu0 0.0
      %1598 = vmatprep.subr.mxu0 0.0
      %1599 = vmatpush1.msra.mxu0 0.0
      %1600 = vmatprep.subr.mxu0 0.0
      %1601 = vmatpush1.msra.mxu0 0.0
      %1602 = vmatprep.subr.mxu0 0.0
      %1603 = vmatpush1.msra.mxu0 0.0
      %1604 = vmatprep.subr.mxu0 0.0
      %1605 = vmatpush1.msra.mxu0 0.0
      %1606 = vmatprep.subr.mxu0 0.0
      %1607 = vmatpush1.msra.mxu0 0.0
      %1608 = vmatprep.subr.mxu0 0.0
      %1609 = vmatpush1.msra.mxu0 0.0
      %1610 = vmatprep.subr.mxu0 0.0
      %1611 = vmatpush1.msra.mxu0 0.0
      %1612 = vmatprep.subr.mxu0 0.0
      %1613 = vmatpush1.msra.mxu0 0.0
      %1614 = vmatprep.subr.mxu0 0.0
      %1615 = vmatpush1.msra.mxu0 0.0
      %1616 = vmatprep.subr.mxu0 0.0
      %1617 = vmatpush1.msra.mxu0 0.0
      %1618 = vmatprep.subr.mxu0 0.0
      %1619 = vmatpush1.msra.mxu0 0.0
      %1620 = vmatprep.subr.mxu0 0.0
      %1621 = vmatpush1.msra.mxu0 0.0
      %1622 = vmatprep.subr.mxu0 0.0
      %1623 = vmatpush1.msra.mxu0 0.0
      %1624 = vmatprep.subr.mxu0 0.0
      %1625 = vmatpush1.msra.mxu0 0.0
      %1626 = vmatprep.subr.mxu0 0.0
      %1627 = vmatpush1.msra.mxu0 0.0
      %1628 = vmatprep.subr.mxu0 0.0
      %1629 = vmatpush1.msra.mxu0 0.0
      %1630 = vmatprep.subr.mxu0 0.0
      %1631 = vmatpush1.msra.mxu0 0.0
      %1632 = vmatprep.subr.mxu0 0.0
      %1633 = vmatpush1.msra.mxu0 0.0
      %1634 = vmatprep.subr.mxu0 0.0
      %1635 = vmatpush1.msra.mxu0 0.0
      %1636 = vmatprep.mubr.f32.mxu0 0.0
      %1637 = vmatmul.mubr.f32.gmra.mrb[0].mxu0 %v1489
      %v1638 = vpop.f32.mrb[0].mxu0
      %v1639 = vadd.f32 0.0, %v1638
      %v1640 = vpop.f32.mrb[0].mxu0
      %v1641 = vadd.f32 0.0, %v1640
      %1642 = vdwg.mxu0
      %1643 = vmatprep.subr.mxu0 0.0
      %1644 = vmatpush1.msra.mxu0 %v1499
      %1645 = vmatprep.subr.mxu0 0.0
      %1646 = vmatpush1.msra.mxu0 0.0
      %1647 = vmatprep.subr.mxu0 0.0
      %1648 = vmatpush1.msra.mxu0 0.0
      %1649 = vmatprep.subr.mxu0 0.0
      %1650 = vmatpush1.msra.mxu0 0.0
      %1651 = vmatprep.subr.mxu0 0.0
      %1652 = vmatpush1.msra.mxu0 0.0
      %1653 = vmatprep.subr.mxu0 0.0
      %1654 = vmatpush1.msra.mxu0 0.0
      %1655 = vmatprep.subr.mxu0 0.0
      %1656 = vmatpush1.msra.mxu0 0.0
      %1657 = vmatprep.subr.mxu0 0.0
      %1658 = vmatpush1.msra.mxu0 0.0
      %1659 = vmatprep.subr.mxu0 0.0
      %1660 = vmatpush1.msra.mxu0 0.0
      %1661 = vmatprep.subr.mxu0 0.0
      %1662 = vmatpush1.msra.mxu0 0.0
      %1663 = vmatprep.subr.mxu0 0.0
      %1664 = vmatpush1.msra.mxu0 0.0
      %1665 = vmatprep.subr.mxu0 0.0
      %1666 = vmatpush1.msra.mxu0 0.0
      %1667 = vmatprep.subr.mxu0 0.0
      %1668 = vmatpush1.msra.mxu0 0.0
      %1669 = vmatprep.subr.mxu0 0.0
      %1670 = vmatpush1.msra.mxu0 0.0
      %1671 = vmatprep.subr.mxu0 0.0
      %1672 = vmatpush1.msra.mxu0 0.0
      %1673 = vmatprep.subr.mxu0 0.0
      %1674 = vmatpush1.msra.mxu0 0.0
      %1675 = vmatprep.subr.mxu0 0.0
      %1676 = vmatpush1.msra.mxu0 0.0
      %1677 = vmatprep.subr.mxu0 0.0
      %1678 = vmatpush1.msra.mxu0 0.0
      %1679 = vmatprep.subr.mxu0 0.0
      %1680 = vmatpush1.msra.mxu0 0.0
      %1681 = vmatprep.subr.mxu0 0.0
      %1682 = vmatpush1.msra.mxu0 0.0
      %1683 = vmatprep.subr.mxu0 0.0
      %1684 = vmatpush1.msra.mxu0 0.0
      %1685 = vmatprep.subr.mxu0 0.0
      %1686 = vmatpush1.msra.mxu0 0.0
      %1687 = vmatprep.subr.mxu0 0.0
      %1688 = vmatpush1.msra.mxu0 0.0
      %1689 = vmatprep.subr.mxu0 0.0
      %1690 = vmatpush1.msra.mxu0 0.0
      %1691 = vmatprep.subr.mxu0 0.0
      %1692 = vmatpush1.msra.mxu0 0.0
      %1693 = vmatprep.subr.mxu0 0.0
      %1694 = vmatpush1.msra.mxu0 0.0
      %1695 = vmatprep.subr.mxu0 0.0
      %1696 = vmatpush1.msra.mxu0 0.0
      %1697 = vmatprep.subr.mxu0 0.0
      %1698 = vmatpush1.msra.mxu0 0.0
      %1699 = vmatprep.subr.mxu0 0.0
      %1700 = vmatpush1.msra.mxu0 0.0
      %1701 = vmatprep.subr.mxu0 0.0
      %1702 = vmatpush1.msra.mxu0 0.0
      %1703 = vmatprep.subr.mxu0 0.0
      %1704 = vmatpush1.msra.mxu0 0.0
      %1705 = vmatprep.subr.mxu0 0.0
      %1706 = vmatpush1.msra.mxu0 0.0
      %1707 = vmatprep.mubr.f32.mxu0 0.0
      %1708 = vmatmul.mubr.f32.gmra.mrb[0].mxu0 %v1489
      %v1709 = vpop.f32.mrb[0].mxu0
      %v1710 = vadd.f32 0.0, %v1709
      %v1711 = vpop.f32.mrb[0].mxu0
      %1712 = vdwg.mxu0
      %v1713 = vadd.f32 %v1463, %v1568
      %v1714 = vadd.f32 %v1464, %v1570
      %v1715 = vadd.f32 %v1465, %v1639
      %v1716 = vadd.f32 %v1466, %v1641
      %v1717 = vadd.f32 %v1467, %v1710
      %s1718 = scalar_lea.vmem %s1, 48
      %v1719 = vld [vmem:[%s1718] sm:$0xff]
      %1720 = vrot.lane.b32.xlu0 %v236, 48
      %v1721 = vpop.permute.xlu0 %1720
      %1722 = vrot.lane.b32.xlu0 %v245, 48
      %v1723 = vpop.permute.xlu0 %1722
      %1724 = vrot.lane.b32.xlu0 %v237, 48
      %v1725 = vpop.permute.xlu0 %1724
      %1726 = vrot.lane.b32.xlu0 %v246, 48
      %v1727 = vpop.permute.xlu0 %1726
      %1728 = vrot.lane.b32.xlu0 %v238, 48
      %v1729 = vpop.permute.xlu0 %1728
      %1730 = vrot.lane.b32.xlu0 %v247, 48
      %v1731 = vpop.permute.xlu0 %1730
      %vm1732 = vcmask 392192
      %v1733 = vsel %vm1732, %v1721, %v1723
      %v1734 = vsel %vm1732, %v1723, %v1725
      %v1735 = vsel %vm1732, %v1725, %v1727
      %v1736 = vsel %vm1732, %v1727, %v1729
      %v1737 = vsel %vm1732, %v1729, %v1731
      %v1739 = vsel %vm266, %v1719, 0
      %v1741 = vsel %vm270, %v1733, 0
      %v1743 = vsel %vm270, %v1734, 0
      %v1745 = vsel %vm270, %v1735, 0
      %v1747 = vsel %vm270, %v1736, 0
      %v1749 = vsel %vm270, %v1737, 0
      %1751 = vmatprep.subr.mxu0 %v1743
      %1752 = vmatpush1.msra.mxu0 %v1741
      %1753 = vmatprep.subr.mxu0 0.0
      %1754 = vmatpush1.msra.mxu0 0.0
      %1755 = vmatprep.subr.mxu0 0.0
      %1756 = vmatpush1.msra.mxu0 0.0
      %1757 = vmatprep.subr.mxu0 0.0
      %1758 = vmatpush1.msra.mxu0 0.0
      %1759 = vmatprep.subr.mxu0 0.0
      %1760 = vmatpush1.msra.mxu0 0.0
      %1761 = vmatprep.subr.mxu0 0.0
      %1762 = vmatpush1.msra.mxu0 0.0
      %1763 = vmatprep.subr.mxu0 0.0
      %1764 = vmatpush1.msra.mxu0 0.0
      %1765 = vmatprep.subr.mxu0 0.0
      %1766 = vmatpush1.msra.mxu0 0.0
      %1767 = vmatprep.subr.mxu0 0.0
      %1768 = vmatpush1.msra.mxu0 0.0
      %1769 = vmatprep.subr.mxu0 0.0
      %1770 = vmatpush1.msra.mxu0 0.0
      %1771 = vmatprep.subr.mxu0 0.0
      %1772 = vmatpush1.msra.mxu0 0.0
      %1773 = vmatprep.subr.mxu0 0.0
      %1774 = vmatpush1.msra.mxu0 0.0
      %1775 = vmatprep.subr.mxu0 0.0
      %1776 = vmatpush1.msra.mxu0 0.0
      %1777 = vmatprep.subr.mxu0 0.0
      %1778 = vmatpush1.msra.mxu0 0.0
      %1779 = vmatprep.subr.mxu0 0.0
      %1780 = vmatpush1.msra.mxu0 0.0
      %1781 = vmatprep.subr.mxu0 0.0
      %1782 = vmatpush1.msra.mxu0 0.0
      %1783 = vmatprep.subr.mxu0 0.0
      %1784 = vmatpush1.msra.mxu0 0.0
      %1785 = vmatprep.subr.mxu0 0.0
      %1786 = vmatpush1.msra.mxu0 0.0
      %1787 = vmatprep.subr.mxu0 0.0
      %1788 = vmatpush1.msra.mxu0 0.0
      %1789 = vmatprep.subr.mxu0 0.0
      %1790 = vmatpush1.msra.mxu0 0.0
      %1791 = vmatprep.subr.mxu0 0.0
      %1792 = vmatpush1.msra.mxu0 0.0
      %1793 = vmatprep.subr.mxu0 0.0
      %1794 = vmatpush1.msra.mxu0 0.0
      %1795 = vmatprep.subr.mxu0 0.0
      %1796 = vmatpush1.msra.mxu0 0.0
      %1797 = vmatprep.subr.mxu0 0.0
      %1798 = vmatpush1.msra.mxu0 0.0
      %1799 = vmatprep.subr.mxu0 0.0
      %1800 = vmatpush1.msra.mxu0 0.0
      %1801 = vmatprep.subr.mxu0 0.0
      %1802 = vmatpush1.msra.mxu0 0.0
      %1803 = vmatprep.subr.mxu0 0.0
      %1804 = vmatpush1.msra.mxu0 0.0
      %1805 = vmatprep.subr.mxu0 0.0
      %1806 = vmatpush1.msra.mxu0 0.0
      %1807 = vmatprep.subr.mxu0 0.0
      %1808 = vmatpush1.msra.mxu0 0.0
      %1809 = vmatprep.subr.mxu0 0.0
      %1810 = vmatpush1.msra.mxu0 0.0
      %1811 = vmatprep.subr.mxu0 0.0
      %1812 = vmatpush1.msra.mxu0 0.0
      %1813 = vmatprep.subr.mxu0 0.0
      %1814 = vmatpush1.msra.mxu0 0.0
      %1815 = vmatprep.mubr.f32.mxu0 0.0
      %1816 = vmatmul.mubr.f32.gmra.mrb[0].mxu0 %v1739
      %v1817 = vpop.f32.mrb[0].mxu0
      %v1818 = vadd.f32 0.0, %v1817
      %v1819 = vpop.f32.mrb[0].mxu0
      %v1820 = vadd.f32 0.0, %v1819
      %1821 = vdwg.mxu0
      %1822 = vmatprep.subr.mxu0 %v1747
      %1823 = vmatpush1.msra.mxu0 %v1745
      %1824 = vmatprep.subr.mxu0 0.0
      %1825 = vmatpush1.msra.mxu0 0.0
      %1826 = vmatprep.subr.mxu0 0.0
      %1827 = vmatpush1.msra.mxu0 0.0
      %1828 = vmatprep.subr.mxu0 0.0
      %1829 = vmatpush1.msra.mxu0 0.0
      %1830 = vmatprep.subr.mxu0 0.0
      %1831 = vmatpush1.msra.mxu0 0.0
      %1832 = vmatprep.subr.mxu0 0.0
      %1833 = vmatpush1.msra.mxu0 0.0
      %1834 = vmatprep.subr.mxu0 0.0
      %1835 = vmatpush1.msra.mxu0 0.0
      %1836 = vmatprep.subr.mxu0 0.0
      %1837 = vmatpush1.msra.mxu0 0.0
      %1838 = vmatprep.subr.mxu0 0.0
      %1839 = vmatpush1.msra.mxu0 0.0
      %1840 = vmatprep.subr.mxu0 0.0
      %1841 = vmatpush1.msra.mxu0 0.0
      %1842 = vmatprep.subr.mxu0 0.0
      %1843 = vmatpush1.msra.mxu0 0.0
      %1844 = vmatprep.subr.mxu0 0.0
      %1845 = vmatpush1.msra.mxu0 0.0
      %1846 = vmatprep.subr.mxu0 0.0
      %1847 = vmatpush1.msra.mxu0 0.0
      %1848 = vmatprep.subr.mxu0 0.0
      %1849 = vmatpush1.msra.mxu0 0.0
      %1850 = vmatprep.subr.mxu0 0.0
      %1851 = vmatpush1.msra.mxu0 0.0
      %1852 = vmatprep.subr.mxu0 0.0
      %1853 = vmatpush1.msra.mxu0 0.0
      %1854 = vmatprep.subr.mxu0 0.0
      %1855 = vmatpush1.msra.mxu0 0.0
      %1856 = vmatprep.subr.mxu0 0.0
      %1857 = vmatpush1.msra.mxu0 0.0
      %1858 = vmatprep.subr.mxu0 0.0
      %1859 = vmatpush1.msra.mxu0 0.0
      %1860 = vmatprep.subr.mxu0 0.0
      %1861 = vmatpush1.msra.mxu0 0.0
      %1862 = vmatprep.subr.mxu0 0.0
      %1863 = vmatpush1.msra.mxu0 0.0
      %1864 = vmatprep.subr.mxu0 0.0
      %1865 = vmatpush1.msra.mxu0 0.0
      %1866 = vmatprep.subr.mxu0 0.0
      %1867 = vmatpush1.msra.mxu0 0.0
      %1868 = vmatprep.subr.mxu0 0.0
      %1869 = vmatpush1.msra.mxu0 0.0
      %1870 = vmatprep.subr.mxu0 0.0
      %1871 = vmatpush1.msra.mxu0 0.0
      %1872 = vmatprep.subr.mxu0 0.0
      %1873 = vmatpush1.msra.mxu0 0.0
      %1874 = vmatprep.subr.mxu0 0.0
      %1875 = vmatpush1.msra.mxu0 0.0
      %1876 = vmatprep.subr.mxu0 0.0
      %1877 = vmatpush1.msra.mxu0 0.0
      %1878 = vmatprep.subr.mxu0 0.0
      %1879 = vmatpush1.msra.mxu0 0.0
      %1880 = vmatprep.subr.mxu0 0.0
      %1881 = vmatpush1.msra.mxu0 0.0
      %1882 = vmatprep.subr.mxu0 0.0
      %1883 = vmatpush1.msra.mxu0 0.0
      %1884 = vmatprep.subr.mxu0 0.0
      %1885 = vmatpush1.msra.mxu0 0.0
      %1886 = vmatprep.mubr.f32.mxu0 0.0
      %1887 = vmatmul.mubr.f32.gmra.mrb[0].mxu0 %v1739
      %v1888 = vpop.f32.mrb[0].mxu0
      %v1889 = vadd.f32 0.0, %v1888
      %v1890 = vpop.f32.mrb[0].mxu0
      %v1891 = vadd.f32 0.0, %v1890
      %1892 = vdwg.mxu0
      %1893 = vmatprep.subr.mxu0 0.0
      %1894 = vmatpush1.msra.mxu0 %v1749
      %1895 = vmatprep.subr.mxu0 0.0
      %1896 = vmatpush1.msra.mxu0 0.0
      %1897 = vmatprep.subr.mxu0 0.0
      %1898 = vmatpush1.msra.mxu0 0.0
      %1899 = vmatprep.subr.mxu0 0.0
      %1900 = vmatpush1.msra.mxu0 0.0
      %1901 = vmatprep.subr.mxu0 0.0
      %1902 = vmatpush1.msra.mxu0 0.0
      %1903 = vmatprep.subr.mxu0 0.0
      %1904 = vmatpush1.msra.mxu0 0.0
      %1905 = vmatprep.subr.mxu0 0.0
      %1906 = vmatpush1.msra.mxu0 0.0
      %1907 = vmatprep.subr.mxu0 0.0
      %1908 = vmatpush1.msra.mxu0 0.0
      %1909 = vmatprep.subr.mxu0 0.0
      %1910 = vmatpush1.msra.mxu0 0.0
      %1911 = vmatprep.subr.mxu0 0.0
      %1912 = vmatpush1.msra.mxu0 0.0
      %1913 = vmatprep.subr.mxu0 0.0
      %1914 = vmatpush1.msra.mxu0 0.0
      %1915 = vmatprep.subr.mxu0 0.0
      %1916 = vmatpush1.msra.mxu0 0.0
      %1917 = vmatprep.subr.mxu0 0.0
      %1918 = vmatpush1.msra.mxu0 0.0
      %1919 = vmatprep.subr.mxu0 0.0
      %1920 = vmatpush1.msra.mxu0 0.0
      %1921 = vmatprep.subr.mxu0 0.0
      %1922 = vmatpush1.msra.mxu0 0.0
      %1923 = vmatprep.subr.mxu0 0.0
      %1924 = vmatpush1.msra.mxu0 0.0
      %1925 = vmatprep.subr.mxu0 0.0
      %1926 = vmatpush1.msra.mxu0 0.0
      %1927 = vmatprep.subr.mxu0 0.0
      %1928 = vmatpush1.msra.mxu0 0.0
      %1929 = vmatprep.subr.mxu0 0.0
      %1930 = vmatpush1.msra.mxu0 0.0
      %1931 = vmatprep.subr.mxu0 0.0
      %1932 = vmatpush1.msra.mxu0 0.0
      %1933 = vmatprep.subr.mxu0 0.0
      %1934 = vmatpush1.msra.mxu0 0.0
      %1935 = vmatprep.subr.mxu0 0.0
      %1936 = vmatpush1.msra.mxu0 0.0
      %1937 = vmatprep.subr.mxu0 0.0
      %1938 = vmatpush1.msra.mxu0 0.0
      %1939 = vmatprep.subr.mxu0 0.0
      %1940 = vmatpush1.msra.mxu0 0.0
      %1941 = vmatprep.subr.mxu0 0.0
      %1942 = vmatpush1.msra.mxu0 0.0
      %1943 = vmatprep.subr.mxu0 0.0
      %1944 = vmatpush1.msra.mxu0 0.0
      %1945 = vmatprep.subr.mxu0 0.0
      %1946 = vmatpush1.msra.mxu0 0.0
      %1947 = vmatprep.subr.mxu0 0.0
      %1948 = vmatpush1.msra.mxu0 0.0
      %1949 = vmatprep.subr.mxu0 0.0
      %1950 = vmatpush1.msra.mxu0 0.0
      %1951 = vmatprep.subr.mxu0 0.0
      %1952 = vmatpush1.msra.mxu0 0.0
      %1953 = vmatprep.subr.mxu0 0.0
      %1954 = vmatpush1.msra.mxu0 0.0
      %1955 = vmatprep.subr.mxu0 0.0
      %1956 = vmatpush1.msra.mxu0 0.0
      %1957 = vmatprep.mubr.f32.mxu0 0.0
      %1958 = vmatmul.mubr.f32.gmra.mrb[0].mxu0 %v1739
      %v1959 = vpop.f32.mrb[0].mxu0
      %v1960 = vadd.f32 0.0, %v1959
      %v1961 = vpop.f32.mrb[0].mxu0
      %1962 = vdwg.mxu0
      %v1963 = vadd.f32 %v1713, %v1818
      %v1964 = vadd.f32 %v1714, %v1820
      %v1965 = vadd.f32 %v1715, %v1889
      %v1966 = vadd.f32 %v1716, %v1891
      %v1967 = vadd.f32 %v1717, %v1960
      %s1968 = scalar_lea.vmem %s1, 56
      %v1969 = vld [vmem:[%s1968] sm:$0xff]
      %1970 = vrot.lane.b32.xlu0 %v236, 47
      %v1971 = vpop.permute.xlu0 %1970
      %1972 = vrot.lane.b32.xlu0 %v245, 47
      %v1973 = vpop.permute.xlu0 %1972
      %1974 = vrot.lane.b32.xlu0 %v237, 47
      %v1975 = vpop.permute.xlu0 %1974
      %1976 = vrot.lane.b32.xlu0 %v246, 47
      %v1977 = vpop.permute.xlu0 %1976
      %1978 = vrot.lane.b32.xlu0 %v238, 47
      %v1979 = vpop.permute.xlu0 %1978
      %1980 = vrot.lane.b32.xlu0 %v247, 47
      %v1981 = vpop.permute.xlu0 %1980
      %vm1982 = vcmask 384000
      %v1983 = vsel %vm1982, %v1971, %v1973
      %v1984 = vsel %vm1982, %v1973, %v1975
      %v1985 = vsel %vm1982, %v1975, %v1977
      %v1986 = vsel %vm1982, %v1977, %v1979
      %v1987 = vsel %vm1982, %v1979, %v1981
      %v1989 = vsel %vm266, %v1969, 0
      %v1991 = vsel %vm270, %v1983, 0
      %v1993 = vsel %vm270, %v1984, 0
      %v1995 = vsel %vm270, %v1985, 0
      %v1997 = vsel %vm270, %v1986, 0
      %v1999 = vsel %vm270, %v1987, 0
      %2001 = vmatprep.subr.mxu0 %v1993
      %2002 = vmatpush1.msra.mxu0 %v1991
      %2003 = vmatprep.subr.mxu0 0.0
      %2004 = vmatpush1.msra.mxu0 0.0
      %2005 = vmatprep.subr.mxu0 0.0
      %2006 = vmatpush1.msra.mxu0 0.0
      %2007 = vmatprep.subr.mxu0 0.0
      %2008 = vmatpush1.msra.mxu0 0.0
      %2009 = vmatprep.subr.mxu0 0.0
      %2010 = vmatpush1.msra.mxu0 0.0
      %2011 = vmatprep.subr.mxu0 0.0
      %2012 = vmatpush1.msra.mxu0 0.0
      %2013 = vmatprep.subr.mxu0 0.0
      %2014 = vmatpush1.msra.mxu0 0.0
      %2015 = vmatprep.subr.mxu0 0.0
      %2016 = vmatpush1.msra.mxu0 0.0
      %2017 = vmatprep.subr.mxu0 0.0
      %2018 = vmatpush1.msra.mxu0 0.0
      %2019 = vmatprep.subr.mxu0 0.0
      %2020 = vmatpush1.msra.mxu0 0.0
      %2021 = vmatprep.subr.mxu0 0.0
      %2022 = vmatpush1.msra.mxu0 0.0
      %2023 = vmatprep.subr.mxu0 0.0
      %2024 = vmatpush1.msra.mxu0 0.0
      %2025 = vmatprep.subr.mxu0 0.0
      %2026 = vmatpush1.msra.mxu0 0.0
      %2027 = vmatprep.subr.mxu0 0.0
      %2028 = vmatpush1.msra.mxu0 0.0
      %2029 = vmatprep.subr.mxu0 0.0
      %2030 = vmatpush1.msra.mxu0 0.0
      %2031 = vmatprep.subr.mxu0 0.0
      %2032 = vmatpush1.msra.mxu0 0.0
      %2033 = vmatprep.subr.mxu0 0.0
      %2034 = vmatpush1.msra.mxu0 0.0
      %2035 = vmatprep.subr.mxu0 0.0
      %2036 = vmatpush1.msra.mxu0 0.0
      %2037 = vmatprep.subr.mxu0 0.0
      %2038 = vmatpush1.msra.mxu0 0.0
      %2039 = vmatprep.subr.mxu0 0.0
      %2040 = vmatpush1.msra.mxu0 0.0
      %2041 = vmatprep.subr.mxu0 0.0
      %2042 = vmatpush1.msra.mxu0 0.0
      %2043 = vmatprep.subr.mxu0 0.0
      %2044 = vmatpush1.msra.mxu0 0.0
      %2045 = vmatprep.subr.mxu0 0.0
      %2046 = vmatpush1.msra.mxu0 0.0
      %2047 = vmatprep.subr.mxu0 0.0
      %2048 = vmatpush1.msra.mxu0 0.0
      %2049 = vmatprep.subr.mxu0 0.0
      %2050 = vmatpush1.msra.mxu0 0.0
      %2051 = vmatprep.subr.mxu0 0.0
      %2052 = vmatpush1.msra.mxu0 0.0
      %2053 = vmatprep.subr.mxu0 0.0
      %2054 = vmatpush1.msra.mxu0 0.0
      %2055 = vmatprep.subr.mxu0 0.0
      %2056 = vmatpush1.msra.mxu0 0.0
      %2057 = vmatprep.subr.mxu0 0.0
      %2058 = vmatpush1.msra.mxu0 0.0
      %2059 = vmatprep.subr.mxu0 0.0
      %2060 = vmatpush1.msra.mxu0 0.0
      %2061 = vmatprep.subr.mxu0 0.0
      %2062 = vmatpush1.msra.mxu0 0.0
      %2063 = vmatprep.subr.mxu0 0.0
      %2064 = vmatpush1.msra.mxu0 0.0
      %2065 = vmatprep.mubr.f32.mxu0 0.0
      %2066 = vmatmul.mubr.f32.gmra.mrb[0].mxu0 %v1989
      %v2067 = vpop.f32.mrb[0].mxu0
      %v2068 = vadd.f32 0.0, %v2067
      %v2069 = vpop.f32.mrb[0].mxu0
      %v2070 = vadd.f32 0.0, %v2069
      %2071 = vdwg.mxu0
      %2072 = vmatprep.subr.mxu0 %v1997
      %2073 = vmatpush1.msra.mxu0 %v1995
      %2074 = vmatprep.subr.mxu0 0.0
      %2075 = vmatpush1.msra.mxu0 0.0
      %2076 = vmatprep.subr.mxu0 0.0
      %2077 = vmatpush1.msra.mxu0 0.0
      %2078 = vmatprep.subr.mxu0 0.0
      %2079 = vmatpush1.msra.mxu0 0.0
      %2080 = vmatprep.subr.mxu0 0.0
      %2081 = vmatpush1.msra.mxu0 0.0
      %2082 = vmatprep.subr.mxu0 0.0
      %2083 = vmatpush1.msra.mxu0 0.0
      %2084 = vmatprep.subr.mxu0 0.0
      %2085 = vmatpush1.msra.mxu0 0.0
      %2086 = vmatprep.subr.mxu0 0.0
      %2087 = vmatpush1.msra.mxu0 0.0
      %2088 = vmatprep.subr.mxu0 0.0
      %2089 = vmatpush1.msra.mxu0 0.0
      %2090 = vmatprep.subr.mxu0 0.0
      %2091 = vmatpush1.msra.mxu0 0.0
      %2092 = vmatprep.subr.mxu0 0.0
      %2093 = vmatpush1.msra.mxu0 0.0
      %2094 = vmatprep.subr.mxu0 0.0
      %2095 = vmatpush1.msra.mxu0 0.0
      %2096 = vmatprep.subr.mxu0 0.0
      %2097 = vmatpush1.msra.mxu0 0.0
      %2098 = vmatprep.subr.mxu0 0.0
      %2099 = vmatpush1.msra.mxu0 0.0
      %2100 = vmatprep.subr.mxu0 0.0
      %2101 = vmatpush1.msra.mxu0 0.0
      %2102 = vmatprep.subr.mxu0 0.0
      %2103 = vmatpush1.msra.mxu0 0.0
      %2104 = vmatprep.subr.mxu0 0.0
      %2105 = vmatpush1.msra.mxu0 0.0
      %2106 = vmatprep.subr.mxu0 0.0
      %2107 = vmatpush1.msra.mxu0 0.0
      %2108 = vmatprep.subr.mxu0 0.0
      %2109 = vmatpush1.msra.mxu0 0.0
      %2110 = vmatprep.subr.mxu0 0.0
      %2111 = vmatpush1.msra.mxu0 0.0
      %2112 = vmatprep.subr.mxu0 0.0
      %2113 = vmatpush1.msra.mxu0 0.0
      %2114 = vmatprep.subr.mxu0 0.0
      %2115 = vmatpush1.msra.mxu0 0.0
      %2116 = vmatprep.subr.mxu0 0.0
      %2117 = vmatpush1.msra.mxu0 0.0
      %2118 = vmatprep.subr.mxu0 0.0
      %2119 = vmatpush1.msra.mxu0 0.0
      %2120 = vmatprep.subr.mxu0 0.0
      %2121 = vmatpush1.msra.mxu0 0.0
      %2122 = vmatprep.subr.mxu0 0.0
      %2123 = vmatpush1.msra.mxu0 0.0
      %2124 = vmatprep.subr.mxu0 0.0
      %2125 = vmatpush1.msra.mxu0 0.0
      %2126 = vmatprep.subr.mxu0 0.0
      %2127 = vmatpush1.msra.mxu0 0.0
      %2128 = vmatprep.subr.mxu0 0.0
      %2129 = vmatpush1.msra.mxu0 0.0
      %2130 = vmatprep.subr.mxu0 0.0
      %2131 = vmatpush1.msra.mxu0 0.0
      %2132 = vmatprep.subr.mxu0 0.0
      %2133 = vmatpush1.msra.mxu0 0.0
      %2134 = vmatprep.subr.mxu0 0.0
      %2135 = vmatpush1.msra.mxu0 0.0
      %2136 = vmatprep.mubr.f32.mxu0 0.0
      %2137 = vmatmul.mubr.f32.gmra.mrb[0].mxu0 %v1989
      %v2138 = vpop.f32.mrb[0].mxu0
      %v2139 = vadd.f32 0.0, %v2138
      %v2140 = vpop.f32.mrb[0].mxu0
      %v2141 = vadd.f32 0.0, %v2140
      %2142 = vdwg.mxu0
      %2143 = vmatprep.subr.mxu0 0.0
      %2144 = vmatpush1.msra.mxu0 %v1999
      %2145 = vmatprep.subr.mxu0 0.0
      %2146 = vmatpush1.msra.mxu0 0.0
      %2147 = vmatprep.subr.mxu0 0.0
      %2148 = vmatpush1.msra.mxu0 0.0
      %2149 = vmatprep.subr.mxu0 0.0
      %2150 = vmatpush1.msra.mxu0 0.0
      %2151 = vmatprep.subr.mxu0 0.0
      %2152 = vmatpush1.msra.mxu0 0.0
      %2153 = vmatprep.subr.mxu0 0.0
      %2154 = vmatpush1.msra.mxu0 0.0
      %2155 = vmatprep.subr.mxu0 0.0
      %2156 = vmatpush1.msra.mxu0 0.0
      %2157 = vmatprep.subr.mxu0 0.0
      %2158 = vmatpush1.msra.mxu0 0.0
      %2159 = vmatprep.subr.mxu0 0.0
      %2160 = vmatpush1.msra.mxu0 0.0
      %2161 = vmatprep.subr.mxu0 0.0
      %2162 = vmatpush1.msra.mxu0 0.0
      %2163 = vmatprep.subr.mxu0 0.0
      %2164 = vmatpush1.msra.mxu0 0.0
      %2165 = vmatprep.subr.mxu0 0.0
      %2166 = vmatpush1.msra.mxu0 0.0
      %2167 = vmatprep.subr.mxu0 0.0
      %2168 = vmatpush1.msra.mxu0 0.0
      %2169 = vmatprep.subr.mxu0 0.0
      %2170 = vmatpush1.msra.mxu0 0.0
      %2171 = vmatprep.subr.mxu0 0.0
      %2172 = vmatpush1.msra.mxu0 0.0
      %2173 = vmatprep.subr.mxu0 0.0
      %2174 = vmatpush1.msra.mxu0 0.0
      %2175 = vmatprep.subr.mxu0 0.0
      %2176 = vmatpush1.msra.mxu0 0.0
      %2177 = vmatprep.subr.mxu0 0.0
      %2178 = vmatpush1.msra.mxu0 0.0
      %2179 = vmatprep.subr.mxu0 0.0
      %2180 = vmatpush1.msra.mxu0 0.0
      %2181 = vmatprep.subr.mxu0 0.0
      %2182 = vmatpush1.msra.mxu0 0.0
      %2183 = vmatprep.subr.mxu0 0.0
      %2184 = vmatpush1.msra.mxu0 0.0
      %2185 = vmatprep.subr.mxu0 0.0
      %2186 = vmatpush1.msra.mxu0 0.0
      %2187 = vmatprep.subr.mxu0 0.0
      %2188 = vmatpush1.msra.mxu0 0.0
      %2189 = vmatprep.subr.mxu0 0.0
      %2190 = vmatpush1.msra.mxu0 0.0
      %2191 = vmatprep.subr.mxu0 0.0
      %2192 = vmatpush1.msra.mxu0 0.0
      %2193 = vmatprep.subr.mxu0 0.0
      %2194 = vmatpush1.msra.mxu0 0.0
      %2195 = vmatprep.subr.mxu0 0.0
      %2196 = vmatpush1.msra.mxu0 0.0
      %2197 = vmatprep.subr.mxu0 0.0
      %2198 = vmatpush1.msra.mxu0 0.0
      %2199 = vmatprep.subr.mxu0 0.0
      %2200 = vmatpush1.msra.mxu0 0.0
      %2201 = vmatprep.subr.mxu0 0.0
      %2202 = vmatpush1.msra.mxu0 0.0
      %2203 = vmatprep.subr.mxu0 0.0
      %2204 = vmatpush1.msra.mxu0 0.0
      %2205 = vmatprep.subr.mxu0 0.0
      %2206 = vmatpush1.msra.mxu0 0.0
      %2207 = vmatprep.mubr.f32.mxu0 0.0
      %2208 = vmatmul.mubr.f32.gmra.mrb[0].mxu0 %v1989
      %v2209 = vpop.f32.mrb[0].mxu0
      %v2210 = vadd.f32 0.0, %v2209
      %v2211 = vpop.f32.mrb[0].mxu0
      %2212 = vdwg.mxu0
      %v2213 = vadd.f32 %v1963, %v2068
      %v2214 = vadd.f32 %v1964, %v2070
      %v2215 = vadd.f32 %v1965, %v2139
      %v2216 = vadd.f32 %v1966, %v2141
      %v2217 = vadd.f32 %v1967, %v2210
      %s2218 = scalar_lea.vmem %s1, 64
      %v2219 = vld [vmem:[%s2218] sm:$0xff]
      %2220 = vrot.lane.b32.xlu0 %v236, 46
      %v2221 = vpop.permute.xlu0 %2220
      %2222 = vrot.lane.b32.xlu0 %v245, 46
      %v2223 = vpop.permute.xlu0 %2222
      %2224 = vrot.lane.b32.xlu0 %v237, 46
      %v2225 = vpop.permute.xlu0 %2224
      %2226 = vrot.lane.b32.xlu0 %v246, 46
      %v2227 = vpop.permute.xlu0 %2226
      %2228 = vrot.lane.b32.xlu0 %v238, 46
      %v2229 = vpop.permute.xlu0 %2228
      %2230 = vrot.lane.b32.xlu0 %v247, 46
      %v2231 = vpop.permute.xlu0 %2230
      %vm2232 = vcmask 375808
      %v2233 = vsel %vm2232, %v2221, %v2223
      %v2234 = vsel %vm2232, %v2223, %v2225
      %v2235 = vsel %vm2232, %v2225, %v2227
      %v2236 = vsel %vm2232, %v2227, %v2229
      %v2237 = vsel %vm2232, %v2229, %v2231
      %v2239 = vsel %vm266, %v2219, 0
      %v2241 = vsel %vm270, %v2233, 0
      %v2243 = vsel %vm270, %v2234, 0
      %v2245 = vsel %vm270, %v2235, 0
      %v2247 = vsel %vm270, %v2236, 0
      %v2249 = vsel %vm270, %v2237, 0
      %2251 = vmatprep.subr.mxu0 %v2243
      %2252 = vmatpush1.msra.mxu0 %v2241
      %2253 = vmatprep.subr.mxu0 0.0
      %2254 = vmatpush1.msra.mxu0 0.0
      %2255 = vmatprep.subr.mxu0 0.0
      %2256 = vmatpush1.msra.mxu0 0.0
      %2257 = vmatprep.subr.mxu0 0.0
      %2258 = vmatpush1.msra.mxu0 0.0
      %2259 = vmatprep.subr.mxu0 0.0
      %2260 = vmatpush1.msra.mxu0 0.0
      %2261 = vmatprep.subr.mxu0 0.0
      %2262 = vmatpush1.msra.mxu0 0.0
      %2263 = vmatprep.subr.mxu0 0.0
      %2264 = vmatpush1.msra.mxu0 0.0
      %2265 = vmatprep.subr.mxu0 0.0
      %2266 = vmatpush1.msra.mxu0 0.0
      %2267 = vmatprep.subr.mxu0 0.0
      %2268 = vmatpush1.msra.mxu0 0.0
      %2269 = vmatprep.subr.mxu0 0.0
      %2270 = vmatpush1.msra.mxu0 0.0
      %2271 = vmatprep.subr.mxu0 0.0
      %2272 = vmatpush1.msra.mxu0 0.0
      %2273 = vmatprep.subr.mxu0 0.0
      %2274 = vmatpush1.msra.mxu0 0.0
      %2275 = vmatprep.subr.mxu0 0.0
      %2276 = vmatpush1.msra.mxu0 0.0
      %2277 = vmatprep.subr.mxu0 0.0
      %2278 = vmatpush1.msra.mxu0 0.0
      %2279 = vmatprep.subr.mxu0 0.0
      %2280 = vmatpush1.msra.mxu0 0.0
      %2281 = vmatprep.subr.mxu0 0.0
      %2282 = vmatpush1.msra.mxu0 0.0
      %2283 = vmatprep.subr.mxu0 0.0
      %2284 = vmatpush1.msra.mxu0 0.0
      %2285 = vmatprep.subr.mxu0 0.0
      %2286 = vmatpush1.msra.mxu0 0.0
      %2287 = vmatprep.subr.mxu0 0.0
      %2288 = vmatpush1.msra.mxu0 0.0
      %2289 = vmatprep.subr.mxu0 0.0
      %2290 = vmatpush1.msra.mxu0 0.0
      %2291 = vmatprep.subr.mxu0 0.0
      %2292 = vmatpush1.msra.mxu0 0.0
      %2293 = vmatprep.subr.mxu0 0.0
      %2294 = vmatpush1.msra.mxu0 0.0
      %2295 = vmatprep.subr.mxu0 0.0
      %2296 = vmatpush1.msra.mxu0 0.0
      %2297 = vmatprep.subr.mxu0 0.0
      %2298 = vmatpush1.msra.mxu0 0.0
      %2299 = vmatprep.subr.mxu0 0.0
      %2300 = vmatpush1.msra.mxu0 0.0
      %2301 = vmatprep.subr.mxu0 0.0
      %2302 = vmatpush1.msra.mxu0 0.0
      %2303 = vmatprep.subr.mxu0 0.0
      %2304 = vmatpush1.msra.mxu0 0.0
      %2305 = vmatprep.subr.mxu0 0.0
      %2306 = vmatpush1.msra.mxu0 0.0
      %2307 = vmatprep.subr.mxu0 0.0
      %2308 = vmatpush1.msra.mxu0 0.0
      %2309 = vmatprep.subr.mxu0 0.0
      %2310 = vmatpush1.msra.mxu0 0.0
      %2311 = vmatprep.subr.mxu0 0.0
      %2312 = vmatpush1.msra.mxu0 0.0
      %2313 = vmatprep.subr.mxu0 0.0
      %2314 = vmatpush1.msra.mxu0 0.0
      %2315 = vmatprep.mubr.f32.mxu0 0.0
      %2316 = vmatmul.mubr.f32.gmra.mrb[0].mxu0 %v2239
      %v2317 = vpop.f32.mrb[0].mxu0
      %v2318 = vadd.f32 0.0, %v2317
      %v2319 = vpop.f32.mrb[0].mxu0
      %v2320 = vadd.f32 0.0, %v2319
      %2321 = vdwg.mxu0
      %2322 = vmatprep.subr.mxu0 %v2247
      %2323 = vmatpush1.msra.mxu0 %v2245
      %2324 = vmatprep.subr.mxu0 0.0
      %2325 = vmatpush1.msra.mxu0 0.0
      %2326 = vmatprep.subr.mxu0 0.0
      %2327 = vmatpush1.msra.mxu0 0.0
      %2328 = vmatprep.subr.mxu0 0.0
      %2329 = vmatpush1.msra.mxu0 0.0
      %2330 = vmatprep.subr.mxu0 0.0
      %2331 = vmatpush1.msra.mxu0 0.0
      %2332 = vmatprep.subr.mxu0 0.0
      %2333 = vmatpush1.msra.mxu0 0.0
      %2334 = vmatprep.subr.mxu0 0.0
      %2335 = vmatpush1.msra.mxu0 0.0
      %2336 = vmatprep.subr.mxu0 0.0
      %2337 = vmatpush1.msra.mxu0 0.0
      %2338 = vmatprep.subr.mxu0 0.0
      %2339 = vmatpush1.msra.mxu0 0.0
      %2340 = vmatprep.subr.mxu0 0.0
      %2341 = vmatpush1.msra.mxu0 0.0
      %2342 = vmatprep.subr.mxu0 0.0
      %2343 = vmatpush1.msra.mxu0 0.0
      %2344 = vmatprep.subr.mxu0 0.0
      %2345 = vmatpush1.msra.mxu0 0.0
      %2346 = vmatprep.subr.mxu0 0.0
      %2347 = vmatpush1.msra.mxu0 0.0
      %2348 = vmatprep.subr.mxu0 0.0
      %2349 = vmatpush1.msra.mxu0 0.0
      %2350 = vmatprep.subr.mxu0 0.0
      %2351 = vmatpush1.msra.mxu0 0.0
      %2352 = vmatprep.subr.mxu0 0.0
      %2353 = vmatpush1.msra.mxu0 0.0
      %2354 = vmatprep.subr.mxu0 0.0
      %2355 = vmatpush1.msra.mxu0 0.0
      %2356 = vmatprep.subr.mxu0 0.0
      %2357 = vmatpush1.msra.mxu0 0.0
      %2358 = vmatprep.subr.mxu0 0.0
      %2359 = vmatpush1.msra.mxu0 0.0
      %2360 = vmatprep.subr.mxu0 0.0
      %2361 = vmatpush1.msra.mxu0 0.0
      %2362 = vmatprep.subr.mxu0 0.0
      %2363 = vmatpush1.msra.mxu0 0.0
      %2364 = vmatprep.subr.mxu0 0.0
      %2365 = vmatpush1.msra.mxu0 0.0
      %2366 = vmatprep.subr.mxu0 0.0
      %2367 = vmatpush1.msra.mxu0 0.0
      %2368 = vmatprep.subr.mxu0 0.0
      %2369 = vmatpush1.msra.mxu0 0.0
      %2370 = vmatprep.subr.mxu0 0.0
      %2371 = vmatpush1.msra.mxu0 0.0
      %2372 = vmatprep.subr.mxu0 0.0
      %2373 = vmatpush1.msra.mxu0 0.0
      %2374 = vmatprep.subr.mxu0 0.0
      %2375 = vmatpush1.msra.mxu0 0.0
      %2376 = vmatprep.subr.mxu0 0.0
      %2377 = vmatpush1.msra.mxu0 0.0
      %2378 = vmatprep.subr.mxu0 0.0
      %2379 = vmatpush1.msra.mxu0 0.0
      %2380 = vmatprep.subr.mxu0 0.0
      %2381 = vmatpush1.msra.mxu0 0.0
      %2382 = vmatprep.subr.mxu0 0.0
      %2383 = vmatpush1.msra.mxu0 0.0
      %2384 = vmatprep.subr.mxu0 0.0
      %2385 = vmatpush1.msra.mxu0 0.0
      %2386 = vmatprep.mubr.f32.mxu0 0.0
      %2387 = vmatmul.mubr.f32.gmra.mrb[0].mxu0 %v2239
      %v2388 = vpop.f32.mrb[0].mxu0
      %v2389 = vadd.f32 0.0, %v2388
      %v2390 = vpop.f32.mrb[0].mxu0
      %v2391 = vadd.f32 0.0, %v2390
      %2392 = vdwg.mxu0
      %2393 = vmatprep.subr.mxu0 0.0
      %2394 = vmatpush1.msra.mxu0 %v2249
      %2395 = vmatprep.subr.mxu0 0.0
      %2396 = vmatpush1.msra.mxu0 0.0
      %2397 = vmatprep.subr.mxu0 0.0
      %2398 = vmatpush1.msra.mxu0 0.0
      %2399 = vmatprep.subr.mxu0 0.0
      %2400 = vmatpush1.msra.mxu0 0.0
      %2401 = vmatprep.subr.mxu0 0.0
      %2402 = vmatpush1.msra.mxu0 0.0
      %2403 = vmatprep.subr.mxu0 0.0
      %2404 = vmatpush1.msra.mxu0 0.0
      %2405 = vmatprep.subr.mxu0 0.0
      %2406 = vmatpush1.msra.mxu0 0.0
      %2407 = vmatprep.subr.mxu0 0.0
      %2408 = vmatpush1.msra.mxu0 0.0
      %2409 = vmatprep.subr.mxu0 0.0
      %2410 = vmatpush1.msra.mxu0 0.0
      %2411 = vmatprep.subr.mxu0 0.0
      %2412 = vmatpush1.msra.mxu0 0.0
      %2413 = vmatprep.subr.mxu0 0.0
      %2414 = vmatpush1.msra.mxu0 0.0
      %2415 = vmatprep.subr.mxu0 0.0
      %2416 = vmatpush1.msra.mxu0 0.0
      %2417 = vmatprep.subr.mxu0 0.0
      %2418 = vmatpush1.msra.mxu0 0.0
      %2419 = vmatprep.subr.mxu0 0.0
      %2420 = vmatpush1.msra.mxu0 0.0
      %2421 = vmatprep.subr.mxu0 0.0
      %2422 = vmatpush1.msra.mxu0 0.0
      %2423 = vmatprep.subr.mxu0 0.0
      %2424 = vmatpush1.msra.mxu0 0.0
      %2425 = vmatprep.subr.mxu0 0.0
      %2426 = vmatpush1.msra.mxu0 0.0
      %2427 = vmatprep.subr.mxu0 0.0
      %2428 = vmatpush1.msra.mxu0 0.0
      %2429 = vmatprep.subr.mxu0 0.0
      %2430 = vmatpush1.msra.mxu0 0.0
      %2431 = vmatprep.subr.mxu0 0.0
      %2432 = vmatpush1.msra.mxu0 0.0
      %2433 = vmatprep.subr.mxu0 0.0
      %2434 = vmatpush1.msra.mxu0 0.0
      %2435 = vmatprep.subr.mxu0 0.0
      %2436 = vmatpush1.msra.mxu0 0.0
      %2437 = vmatprep.subr.mxu0 0.0
      %2438 = vmatpush1.msra.mxu0 0.0
      %2439 = vmatprep.subr.mxu0 0.0
      %2440 = vmatpush1.msra.mxu0 0.0
      %2441 = vmatprep.subr.mxu0 0.0
      %2442 = vmatpush1.msra.mxu0 0.0
      %2443 = vmatprep.subr.mxu0 0.0
      %2444 = vmatpush1.msra.mxu0 0.0
      %2445 = vmatprep.subr.mxu0 0.0
      %2446 = vmatpush1.msra.mxu0 0.0
      %2447 = vmatprep.subr.mxu0 0.0
      %2448 = vmatpush1.msra.mxu0 0.0
      %2449 = vmatprep.subr.mxu0 0.0
      %2450 = vmatpush1.msra.mxu0 0.0
      %2451 = vmatprep.subr.mxu0 0.0
      %2452 = vmatpush1.msra.mxu0 0.0
      %2453 = vmatprep.subr.mxu0 0.0
      %2454 = vmatpush1.msra.mxu0 0.0
      %2455 = vmatprep.subr.mxu0 0.0
      %2456 = vmatpush1.msra.mxu0 0.0
      %2457 = vmatprep.mubr.f32.mxu0 0.0
      %2458 = vmatmul.mubr.f32.gmra.mrb[0].mxu0 %v2239
      %v2459 = vpop.f32.mrb[0].mxu0
      %v2460 = vadd.f32 0.0, %v2459
      %v2461 = vpop.f32.mrb[0].mxu0
      %2462 = vdwg.mxu0
      %v2463 = vadd.f32 %v2213, %v2318
      %v2464 = vadd.f32 %v2214, %v2320
      %v2465 = vadd.f32 %v2215, %v2389
      %v2466 = vadd.f32 %v2216, %v2391
      %v2467 = vadd.f32 %v2217, %v2460
      %v2468 = vld [vmem:[%s2] sm:$0xff]
      %2470 = vset.pattern.permute.xlu0 0
      %2471 = vperm.xlu0 %2470, %v2468
      %v2472 = vpop.permute.xlu0 %2471
      %v2474 = vadd.f32 %v2463, %v2472
      %v2475 = vadd.f32 %v2464, %v2472
      %v2476 = vadd.f32 %v2465, %v2472
      %v2477 = vadd.f32 %v2466, %v2472
      %v2478 = vadd.f32 %v2467, %v2472
      %2479 = vst [vmem:[%s231] sm:$0xff] %v2474
      %2480 = vst [vmem:[%s231 + $0x8] sm:$0xff] %v2475
      %2481 = vst [vmem:[%s231 + $0x10] sm:$0xff] %v2476
      %2482 = vst [vmem:[%s231 + $0x18] sm:$0xff] %v2477
      %2483 = vst [vmem:[%s231 + $0x20] sm:$0xff] %v2478
      %v2484 = vld [vmem:[%s3] sm:$0x1f]
      %v2486 = vlaneseq
      %v2487 = vshrl.u32 %v2486, 7
      %v2488 = vsub.s32 0, %v2487
      %v2489 = vrot.slane %v2484, %v2488
      %v2490 = vlaneseq
      %v2491 = vshrl.u32 %v2490, 7
      %v2492 = vsub.s32 1, %v2491
      %v2493 = vrot.slane %v2484, %v2492
      %v2494 = vlaneseq
      %v2495 = vshrl.u32 %v2494, 7
      %v2496 = vsub.s32 2, %v2495
      %v2497 = vrot.slane %v2484, %v2496
      %v2498 = vlaneseq
      %v2499 = vshrl.u32 %v2498, 7
      %v2500 = vsub.s32 3, %v2499
      %v2501 = vrot.slane %v2484, %v2500
      %v2502 = vlaneseq
      %v2503 = vshrl.u32 %v2502, 7
      %v2504 = vsub.s32 4, %v2503
      %v2505 = vrot.slane %v2484, %v2504
      %v2511 = vmul.f32 %v2474, %v2489
      %v2512 = vmul.f32 %v2475, %v2493
      %v2513 = vmul.f32 %v2476, %v2497
      %v2514 = vmul.f32 %v2477, %v2501
      %v2515 = vmul.f32 %v2478, %v2505
      %v2516 = vadd.f32 %v2511, %v2512
      %v2517 = vadd.f32 %v2516, %v2513
      %v2518 = vadd.f32 %v2517, %v2514
      %v2519 = vadd.f32 %v2518, %v2515
      %2520 = vadd.xlane.f32.xlu0 %v2519
      %v2521 = vpop.xlane.xlu0 %2520
      %vm2522 = vcmask 7168
      %2523 = vst.msk [vmem:[%s235] sm:$0xff] %vm2522, %v2521
      %v2524 = vmul.f32 %v2511, %v2474
      %v2525 = vmul.f32 %v2512, %v2475
      %v2526 = vmul.f32 %v2513, %v2476
      %v2527 = vmul.f32 %v2514, %v2477
      %v2528 = vmul.f32 %v2515, %v2478
      %v2529 = vadd.f32 %v2524, %v2525
      %v2530 = vadd.f32 %v2529, %v2526
      %v2531 = vadd.f32 %v2530, %v2527
      %v2532 = vadd.f32 %v2531, %v2528
      %2533 = vadd.xlane.f32.xlu0 %v2532
      %v2534 = vpop.xlane.xlu0 %2533
      %vm2535 = vcmask 15368
      %2536 = vst.msk [vmem:[%s235] sm:$0xff] %vm2535, %v2534
      %p2537 = scmp.lt.s32.totalorder %s17, 3
      %s2538 = scalar_select %p2537, %s17, 3
      %s2539 = smul.addr %s2538, 5
      %s2540 = smul.addr %s2539, 8
      %s2541 = scalar_lea.vmem %s4, %s2540
      %p2542 = scmp.lt.s32.totalorder %s17, 3
      %s2543 = scalar_select %p2542, %s17, 3
      %s2544 = smul.addr %s2543, 8
      %s2545 = scalar_lea.vmem %s5, %s2544
      // Predicated region
      $region37: #{up_conv_block.2} parent=35 // pred_check
        %p2546 = pneg %p124
      $region38: #{up_conv_block.2} parent=35 // pred_check_branch
        %2548 = sbr.rel (%p2546) target = $region40
      $region39: #{up_conv_block.2} parent=35 // pred_region
        _
      $region40: #{up_conv_block.2} parent=35 // pred_fallthru
        _
      // Predicated region
      $region41: #{up_conv_block.2} parent=35 // pred_check
        %p2549 = pneg %p150
      $region42: #{up_conv_block.2} parent=35 // pred_check_branch
        %2551 = sbr.rel (%p2549) target = $region44
      $region43: #{up_conv_block.2} parent=35 // pred_region
        _
      $region44: #{up_conv_block.2} parent=35 // pred_fallthru
        _
    $region36: #{up_conv_block.2} parent=5 // pred_fallthru
      _
    %p2552 = scmp.le.s32.totalorder 2, %s12
    // Predicated region
    $region45: #{up_conv_block.2} parent=5 // pred_check
      %p2553 = pneg %p2552
    $region46: #{up_conv_block.2} parent=5 // pred_check_branch
      %2555 = sbr.rel (%p2553) target = $region48
    $region47: #{up_conv_block.2} parent=5 // pred_region
      %s2556 = ssub.s32 %s12, 2
      // Predicated region
      $region49: #{up_conv_block.2} parent=47 // pred_check
        %p2557 = pneg %p130
      $region50: #{up_conv_block.2} parent=47 // pred_check_branch
        %2559 = sbr.rel (%p2557) target = $region52
      $region51: #{up_conv_block.2} parent=47 // pred_region
        %p2560 = scmp.lt.s32.totalorder %s18, 3
        %s2561 = scalar_select %p2560, %s18, 3
        %s2562 = smul.addr %s2561, 5
        %s2563 = smul.addr %s2562, 8
        %s2564 = scalar_lea.vmem %s4, %s2563
      $region52: #{up_conv_block.2} parent=47 // pred_fallthru
        _
      // Predicated region
      $region53: #{up_conv_block.2} parent=47 // pred_check
        %p2565 = pneg %p156
      $region54: #{up_conv_block.2} parent=47 // pred_check_branch
        %2567 = sbr.rel (%p2565) target = $region56
      $region55: #{up_conv_block.2} parent=47 // pred_region
        %p2568 = scmp.lt.s32.totalorder %s18, 3
        %s2569 = scalar_select %p2568, %s18, 3
        %s2570 = smul.addr %s2569, 8
        %s2571 = scalar_lea.vmem %s5, %s2570
      $region56: #{up_conv_block.2} parent=47 // pred_fallthru
        _
    $region48: #{up_conv_block.2} parent=5 // pred_fallthru
      _
  $region6: #{up_conv_block.2} parent=0 // loop_footer
    %s16 = sadd.s32 1, %s12
  $region7: #{up_conv_block.2} parent=0 // loop_footer_branch
    %11 = sbr.rel target = $region3
  $region8: #{up_conv_block.2} parent=0 // loop_exit
    _

</llo_original>
